<compile_context>
chip_gen: v5e
topology: v5e:2x2
jax: 0.10.0
libtpu: 0.0.40
codegen_flags: <defaults>
</compile_context>

<pallas_src>
import functools

import jax
import jax.numpy as jnp
from jax.experimental import pallas as pl
from jax.experimental.pallas import tpu as pltpu

# ----------------------------------------------------------------------------
# Model dims (module constants: d_model features, d_ff hidden)
# ----------------------------------------------------------------------------
D_MODEL = 32
D_FF = 64
LN_EPS = 1e-5
LANES = 128
PACK = LANES // D_MODEL          # 4 tokens packed per 128-lane vreg row

# v5e default scoped-VMEM is 16 MiB; 2 (in+out) x 2 (double-buffer) x
# tile_p*128*4B + ~0.6 MiB params must stay under it  =>  tile_p <= ~3584.
MAX_TILE_P = 3584


def _round_up(v, m):
    return ((v + m - 1) // m) * m


def ffn_kernel(x_ref, w1_ref, b1_ref, w2_ref, lnp_ref, seg_ref, o_ref,
               *, precision):
    """One tile of packed token rows (PACK tokens per 128-lane row)."""
    x = x_ref[...].astype(jnp.float32)                       # (TM, 128)

    # conv1 (1x1) == token @ W1 + b1, on block-diagonal packed weights.
    h = jnp.dot(x, w1_ref[...], preferred_element_type=jnp.float32,
                precision=precision) + b1_ref[...]
    h = jnp.maximum(h, 0.0)                                   # (TM, PACK*d_ff)

    # conv2 (1x1) == h @ W2 + b2, then residual add (x is already packed).
    y = jnp.dot(h, w2_ref[...], preferred_element_type=jnp.float32,
                precision=precision)
    y = y + lnp_ref[0:1, :] + x                               # + b2 + residual

    # LayerNorm per 32-lane token segment.  seg_ref is a block-diagonal 1/32
    # averaging matrix, so y @ seg yields each token's mean broadcast across
    # its own 32 lanes (segmented reduce on the MXU, not the VPU).  mean and
    # E[y^2] are independent, so the two 128x128 MXU ops can pipeline.
    mean = jnp.dot(y, seg_ref[...], preferred_element_type=jnp.float32,
                   precision=precision)
    msq = jnp.dot(y * y, seg_ref[...], preferred_element_type=jnp.float32,
                  precision=precision)
    var = jnp.maximum(msq - mean * mean, 0.0)                 # guard cancellation
    out = (y - mean) * jax.lax.rsqrt(var + LN_EPS) * lnp_ref[1:2, :] \
        + lnp_ref[2:3, :]

    o_ref[...] = out.astype(o_ref.dtype)


def pack_ffn_params(w1, b1, w2, b2, gamma, beta):
    """Build block-diagonal packed parameters ONCE per model (hoisted out of
    the per-call path).  w1: [d_model, d_ff], w2: [d_ff, d_model]."""
    eye = jnp.eye(PACK, dtype=jnp.float32)
    w1p = jnp.kron(eye, w1.astype(jnp.float32))               # (128, PACK*d_ff)
    w2p = jnp.kron(eye, w2.astype(jnp.float32))               # (PACK*d_ff, 128)
    b1p = jnp.tile(b1.astype(jnp.float32), PACK).reshape(1, PACK * D_FF)
    # b2 / gamma / beta fused into one (8, 128) slab (rows 0..2 used).
    lnp = jnp.zeros((8, PACK * D_MODEL), jnp.float32)
    lnp = lnp.at[0].set(jnp.tile(b2.astype(jnp.float32), PACK))
    lnp = lnp.at[1].set(jnp.tile(gamma.astype(jnp.float32), PACK))
    lnp = lnp.at[2].set(jnp.tile(beta.astype(jnp.float32), PACK))
    seg = jnp.kron(eye, jnp.full((D_MODEL, D_MODEL), 1.0 / D_MODEL,
                                 dtype=jnp.float32))          # (128, 128)
    return (w1p, b1p, w2p, lnp, seg)


def poswise_ffn(x, packed_params, *, tile_tokens=8192, precision="default"):
    """x: [B, S, d_model] -> [B, S, d_model] (same dtype as x; bf16 in/out
    halves HBM traffic on this bandwidth-bound kernel)."""
    w1p, b1p, w2p, lnp, seg = packed_params
    B, S, D = x.shape
    assert D == D_MODEL
    rows = B * S

    # ---- lane-dense packing: 4 consecutive tokens per 128-lane row ----------
    x2d = x.reshape(rows, D)
    pad_rows = (-rows) % PACK
    if pad_rows:  # tiny alignment pad only (no whole-tensor tile padding)
        x2d = jnp.pad(x2d, ((0, pad_rows), (0, 0)))
    rp = (rows + pad_rows) // PACK
    xp = x2d.reshape(rp, PACK * D)                            # (rp, 128), free reshape

    # ---- tile selection ------------------------------------------------------
    #  * large blocks (~1-2 MiB) to amortize the ~0.35 us per-grid-step cost
    #  * capped for v5e's 16 MiB default scoped VMEM
    #  * keep grid_m >= 2 when possible so v7x's 2nd TensorCore gets work
    max_tile_p = min(max(8, tile_tokens // PACK), MAX_TILE_P)
    half = _round_up(pl.cdiv(rp, 2), 8)
    tile_p = max(8, min(max_tile_p, half))
    grid_m = pl.cdiv(rp, tile_p)                              # ragged final block OK

    # ---- cost estimate (kernel is HBM-bandwidth bound on v6e/v7x) -----------
    itemsize = jnp.dtype(x.dtype).itemsize
    flops_per_row = 2 * LANES * (PACK * D_FF) * 2 + 2 * LANES * LANES * 2
    cost = pl.CostEstimate(
        flops=rp * flops_per_row,
        transcendentals=rp * LANES,
        bytes_accessed=(2 * rp * LANES * itemsize
                        + 4 * (w1p.size + w2p.size + seg.size
                               + b1p.size + lnp.size)))

    const = lambda i: (0, 0)
    kernel = functools.partial(ffn_kernel, precision=precision)
    outp = pl.pallas_call(
        kernel,
        out_shape=jax.ShapeDtypeStruct((rp, PACK * D_MODEL), x.dtype),
        grid_spec=pltpu.PrefetchScalarGridSpec(
            num_scalar_prefetch=0,
            grid=(grid_m,),
            in_specs=[
                # NOTE(v7x): if a profile shows exposed input DMA, add
                # pipeline_mode=pl.Buffered(3) to this x spec.
                pl.BlockSpec((tile_p, PACK * D_MODEL), lambda i: (i, 0)),   # x packed
                pl.BlockSpec((PACK * D_MODEL, PACK * D_FF), const),         # W1 blkdiag
                pl.BlockSpec((1, PACK * D_FF), const),                      # b1
                pl.BlockSpec((PACK * D_FF, PACK * D_MODEL), const),         # W2 blkdiag
                pl.BlockSpec((8, PACK * D_MODEL), const),                   # b2/gamma/beta
                pl.BlockSpec((PACK * D_MODEL, PACK * D_MODEL), const),      # seg-mean
            ],
            out_specs=pl.BlockSpec((tile_p, PACK * D_MODEL), lambda i: (i, 0)),
        ),
        compiler_params=pltpu.CompilerParams(
            dimension_semantics=("parallel",),
        ),
        cost_estimate=cost,
    )(xp, w1p, b1p, w2p, lnp, seg)

    out2d = outp.reshape(rp * PACK, D_MODEL)
    if pad_rows:
        out2d = out2d[:rows]
    return out2d.reshape(B, S, D)


def reference_ffn(x, w1, b1, w2, b2, gamma, beta):
    """Pure-JAX reference matching the PyTorch forward (strict f32 matmuls)."""
    h = jnp.maximum(
        jnp.einsum("bsd,df->bsf", x, w1, precision="highest") + b1, 0.0)
    y = jnp.einsum("bsf,fd->bsd", h, w2, precision="highest") + b2
    y = y + x
    mean = jnp.mean(y, axis=-1, keepdims=True)
    var = jnp.mean((y - mean) ** 2, axis=-1, keepdims=True)
    return ((y - mean) * jax.lax.rsqrt(var + LN_EPS)) * gamma + beta


if __name__ == "__main__":
    key = jax.random.PRNGKey(0)
    k_x, k_w1, k_b1, k_w2, k_b2 = jax.random.split(key, 5)

    B, S = 2, 8  # batch=2, seq=8
    x = jax.random.normal(k_x, (B, S, D_MODEL), dtype=jnp.float32)

    # Deterministic parameter init (Conv1d weights [out,in,1] stored as [in,out]).
    w1 = jax.random.normal(k_w1, (D_MODEL, D_FF), dtype=jnp.float32) * 0.1
    b1 = jax.random.normal(k_b1, (D_FF,), dtype=jnp.float32) * 0.1
    w2 = jax.random.normal(k_w2, (D_FF, D_MODEL), dtype=jnp.float32) * 0.1
    b2 = jax.random.normal(k_b2, (D_MODEL,), dtype=jnp.float32) * 0.1
    gamma = jnp.ones((D_MODEL,), dtype=jnp.float32)   # LayerNorm default init
    beta = jnp.zeros((D_MODEL,), dtype=jnp.float32)

    # Packed parameters built once per model, reused across calls/layers.
    packed = pack_ffn_params(w1, b1, w2, b2, gamma, beta)

    ref = reference_ffn(x, w1, b1, w2, b2, gamma, beta)

    # 1) Strict f32 check: full-precision MXU passes to match the f32 reference.
    out = poswise_ffn(x, packed, precision="highest")
    out = jax.block_until_ready(out)
    assert out.shape == (B, S, D_MODEL)
    assert jnp.allclose(out, ref, atol=1e-4, rtol=1e-4), "f32 mismatch vs reference"

    # 2) Production path: bf16 activation streaming + default (single-pass bf16)
    #    MXU precision.  LN statistics stay in f32 inside the kernel.
    out_bf16 = poswise_ffn(x.astype(jnp.bfloat16), packed, precision="default")
    out_bf16 = jax.block_until_ready(out_bf16)
    assert out_bf16.dtype == jnp.bfloat16
    assert jnp.allclose(out_bf16.astype(jnp.float32), ref,
                        atol=1e-1, rtol=5e-2), "bf16 mismatch vs reference"

    print("KERNEL_OK")
</pallas_src>

<mosaic_0001>
module attributes {stable_mosaic.version = 11 : i64} {
  func.func @ffn_kernel(%arg0: i32, %arg1: memref<8x128xf32, #tpu.memory_space<vmem>>, %arg2: memref<128x256xf32, #tpu.memory_space<vmem>>, %arg3: memref<1x256xf32, #tpu.memory_space<vmem>>, %arg4: memref<256x128xf32, #tpu.memory_space<vmem>>, %arg5: memref<8x128xf32, #tpu.memory_space<vmem>>, %arg6: memref<128x128xf32, #tpu.memory_space<vmem>>, %arg7: memref<8x128xf32, #tpu.memory_space<vmem>>) attributes {dimension_semantics = [#tpu.dimension_semantics<parallel>], iteration_bounds = array<i64: 1>, scalar_prefetch = 0 : i64, scratch_operands = 0 : i64, tpu.core_type = #tpu.core_type<tc>, window_params = [{transform_indices = @transform_0, window_bounds = array<i64: 8, 128>}, {pipeline_mode = #tpu.pipeline_mode<synchronous>, transform_indices = @transform_1, window_bounds = array<i64: 128, 256>}, {pipeline_mode = #tpu.pipeline_mode<synchronous>, transform_indices = @transform_2, window_bounds = array<i64: 1, 256>}, {pipeline_mode = #tpu.pipeline_mode<synchronous>, transform_indices = @transform_3, window_bounds = array<i64: 256, 128>}, {pipeline_mode = #tpu.pipeline_mode<synchronous>, transform_indices = @transform_4, window_bounds = array<i64: 8, 128>}, {pipeline_mode = #tpu.pipeline_mode<synchronous>, transform_indices = @transform_5, window_bounds = array<i64: 128, 128>}, {transform_indices = @transform_6, window_bounds = array<i64: 8, 128>}]} {
    %c0 = arith.constant 0 : index
    %c0_0 = arith.constant 0 : index
    %0 = vector.load %arg1[%c0, %c0_0] : memref<8x128xf32, #tpu.memory_space<vmem>>, vector<8x128xf32>
    %c0_1 = arith.constant 0 : index
    %c0_2 = arith.constant 0 : index
    %1 = vector.load %arg2[%c0_1, %c0_2] : memref<128x256xf32, #tpu.memory_space<vmem>>, vector<128x256xf32>
    %cst = arith.constant dense<0.000000e+00> : vector<8x256xf32>
    %2 = tpu.matmul %0, %1, %cst {dimension_numbers = #tpu.dot_dimension_numbers<[1], [0], [0], [1], [0, 0, 1, 1], [], []>, precision = #tpu.contract_precision<fp32>} : vector<8x128xf32>, vector<128x256xf32>, vector<8x256xf32> -> vector<8x256xf32>
    %c0_3 = arith.constant 0 : index
    %c0_4 = arith.constant 0 : index
    %3 = vector.load %arg3[%c0_3, %c0_4] : memref<1x256xf32, #tpu.memory_space<vmem>>, vector<1x256xf32>
    %4 = vector.broadcast %3 : vector<1x256xf32> to vector<8x256xf32>
    %5 = arith.addf %2, %4 : vector<8x256xf32>
    %cst_5 = arith.constant 0.000000e+00 : f32
    %6 = vector.broadcast %cst_5 : f32 to vector<8x256xf32>
    %7 = arith.maximumf %5, %6 : vector<8x256xf32>
    %c0_6 = arith.constant 0 : index
    %c0_7 = arith.constant 0 : index
    %8 = vector.load %arg4[%c0_6, %c0_7] : memref<256x128xf32, #tpu.memory_space<vmem>>, vector<256x128xf32>
    %cst_8 = arith.constant dense<0.000000e+00> : vector<8x128xf32>
    %9 = tpu.matmul %7, %8, %cst_8 {dimension_numbers = #tpu.dot_dimension_numbers<[1], [0], [0], [1], [0, 0, 1, 1], [], []>, precision = #tpu.contract_precision<fp32>} : vector<8x256xf32>, vector<256x128xf32>, vector<8x128xf32> -> vector<8x128xf32>
    %c0_9 = arith.constant 0 : index
    %c0_10 = arith.constant 0 : index
    %10 = vector.load %arg5[%c0_9, %c0_10] : memref<8x128xf32, #tpu.memory_space<vmem>>, vector<1x128xf32>
    %11 = vector.broadcast %10 : vector<1x128xf32> to vector<8x128xf32>
    %12 = arith.addf %9, %11 : vector<8x128xf32>
    %13 = arith.addf %12, %0 : vector<8x128xf32>
    %c0_11 = arith.constant 0 : index
    %c0_12 = arith.constant 0 : index
    %14 = vector.load %arg6[%c0_11, %c0_12] : memref<128x128xf32, #tpu.memory_space<vmem>>, vector<128x128xf32>
    %cst_13 = arith.constant dense<0.000000e+00> : vector<8x128xf32>
    %15 = tpu.matmul %13, %14, %cst_13 {dimension_numbers = #tpu.dot_dimension_numbers<[1], [0], [0], [1], [0, 0, 1, 1], [], []>, precision = #tpu.contract_precision<fp32>} : vector<8x128xf32>, vector<128x128xf32>, vector<8x128xf32> -> vector<8x128xf32>
    %16 = arith.mulf %13, %13 : vector<8x128xf32>
    %c0_14 = arith.constant 0 : index
    %c0_15 = arith.constant 0 : index
    %17 = vector.load %arg6[%c0_14, %c0_15] : memref<128x128xf32, #tpu.memory_space<vmem>>, vector<128x128xf32>
    %cst_16 = arith.constant dense<0.000000e+00> : vector<8x128xf32>
    %18 = tpu.matmul %16, %17, %cst_16 {dimension_numbers = #tpu.dot_dimension_numbers<[1], [0], [0], [1], [0, 0, 1, 1], [], []>, precision = #tpu.contract_precision<fp32>} : vector<8x128xf32>, vector<128x128xf32>, vector<8x128xf32> -> vector<8x128xf32>
    %19 = arith.mulf %15, %15 : vector<8x128xf32>
    %20 = arith.subf %18, %19 : vector<8x128xf32>
    %cst_17 = arith.constant 0.000000e+00 : f32
    %21 = vector.broadcast %cst_17 : f32 to vector<8x128xf32>
    %22 = arith.maximumf %20, %21 : vector<8x128xf32>
    %23 = arith.subf %13, %15 : vector<8x128xf32>
    %cst_18 = arith.constant 9.99999974E-6 : f32
    %24 = vector.broadcast %cst_18 : f32 to vector<8x128xf32>
    %25 = arith.addf %22, %24 : vector<8x128xf32>
    %26 = math.rsqrt %25 : vector<8x128xf32>
    %27 = arith.mulf %23, %26 : vector<8x128xf32>
    %c1 = arith.constant 1 : index
    %c0_19 = arith.constant 0 : index
    %28 = vector.load %arg5[%c1, %c0_19] : memref<8x128xf32, #tpu.memory_space<vmem>>, vector<1x128xf32>
    %29 = vector.broadcast %28 : vector<1x128xf32> to vector<8x128xf32>
    %30 = arith.mulf %27, %29 : vector<8x128xf32>
    %c2 = arith.constant 2 : index
    %c0_20 = arith.constant 0 : index
    %31 = vector.load %arg5[%c2, %c0_20] : memref<8x128xf32, #tpu.memory_space<vmem>>, vector<1x128xf32>
    %32 = vector.broadcast %31 : vector<1x128xf32> to vector<8x128xf32>
    %33 = arith.addf %30, %32 : vector<8x128xf32>
    %c0_21 = arith.constant 0 : index
    %c0_22 = arith.constant 0 : index
    %34 = vector.load %arg7[%c0_21, %c0_22] : memref<8x128xf32, #tpu.memory_space<vmem>>, vector<8x128xf32>
    tpu.vector_store %arg7[%c0_21, %c0_22], %33 {strides = array<i32>} : memref<8x128xf32, #tpu.memory_space<vmem>>, vector<8x128xf32>,
    return
  }
  func.func @transform_0(%arg0: i32) -> (i32, i32) {
    %c0_i32 = arith.constant 0 : i32
    %c0_i32_0 = arith.constant 0 : i32
    return %arg0, %c0_i32 : i32, i32
  }
  func.func @transform_1(%arg0: i32) -> (i32, i32) {
    %c0_i32 = arith.constant 0 : i32
    %c0_i32_0 = arith.constant 0 : i32
    %c0_i32_1 = arith.constant 0 : i32
    return %c0_i32, %c0_i32_0 : i32, i32
  }
  func.func @transform_2(%arg0: i32) -> (i32, i32) {
    %c0_i32 = arith.constant 0 : i32
    %c0_i32_0 = arith.constant 0 : i32
    %c0_i32_1 = arith.constant 0 : i32
    return %c0_i32, %c0_i32_0 : i32, i32
  }
  func.func @transform_3(%arg0: i32) -> (i32, i32) {
    %c0_i32 = arith.constant 0 : i32
    %c0_i32_0 = arith.constant 0 : i32
    %c0_i32_1 = arith.constant 0 : i32
    return %c0_i32, %c0_i32_0 : i32, i32
  }
  func.func @transform_4(%arg0: i32) -> (i32, i32) {
    %c0_i32 = arith.constant 0 : i32
    %c0_i32_0 = arith.constant 0 : i32
    %c0_i32_1 = arith.constant 0 : i32
    return %c0_i32, %c0_i32_0 : i32, i32
  }
  func.func @transform_5(%arg0: i32) -> (i32, i32) {
    %c0_i32 = arith.constant 0 : i32
    %c0_i32_0 = arith.constant 0 : i32
    %c0_i32_1 = arith.constant 0 : i32
    return %c0_i32, %c0_i32_0 : i32, i32
  }
  func.func @transform_6(%arg0: i32) -> (i32, i32) {
    %c0_i32 = arith.constant 0 : i32
    %c0_i32_0 = arith.constant 0 : i32
    return %arg0, %c0_i32 : i32, i32
  }
}

</mosaic_0001>

<llo_original>
// kernel: tpu_custom_call.1
$region0: #{tpu_custom_call.1}
  #allocation0 [shape = 'u32[]', space=smem, size = 0x4, offset = 0x4, fixed_abs, tag = 'smem constant byte address 0x4 - core index']
  #allocation1 [shape = 'u32[72,128]{1,0:T(1,128)}', space=vmem, size = 0x9000, scoped, tag = 'internal scratch']
  %s0 = inlined_call_operand.hbm [shape: f32[4,128], index: 0, kind: input, shape index: {}]
  %s1 = inlined_call_operand.hbm [shape: f32[128,256], index: 1, kind: input, shape index: {}]
  %s2 = inlined_call_operand.hbm [shape: f32[1,256], index: 2, kind: input, shape index: {}]
  %s3 = inlined_call_operand.hbm [shape: f32[256,128], index: 3, kind: input, shape index: {}]
  %s4 = inlined_call_operand.hbm [shape: f32[8,128], index: 4, kind: input, shape index: {}]
  %s5 = inlined_call_operand.hbm [shape: f32[128,128], index: 5, kind: input, shape index: {}]
  %s6 = inlined_call_operand.hbm [shape: f32[4,128], index: 6, kind: output, shape index: {}]
  %s7 = sld [smem:[#allocation0]]
  $region58: #{tpu_custom_call.1} parent=0
    _
  %s9 = ssub.s32 1, %s7
  %s10 = scalar_select 0, %s9, %s7
  $region1: #{tpu_custom_call.1} parent=0
    #allocation2 [shape = 'u8[4096]{0}', space=vmem, size = 0x1000, scoped, tag = 'input window, operand 0, single buffered']
    #allocation3 [shape = 's32[1]{0}', space=sflag, size = 0x4, scoped, tag = 'scoped memory for tpu_custom_call.1']
    #allocation4 [shape = 's32[1]{0}', space=sflag, size = 0x4, scoped, tag = 'scoped memory for tpu_custom_call.1']
    #allocation5 [shape = 'u8[131072]{0}', space=vmem, size = 0x20000, scoped, tag = 'input window, operand 1, single buffered']
    #allocation6 [shape = 's32[1]{0}', space=sflag, size = 0x4, scoped, tag = 'scoped memory for tpu_custom_call.1']
    #allocation7 [shape = 'u8[1024]{0}', space=vmem, size = 0x400, scoped, tag = 'input window, operand 2, single buffered']
    #allocation8 [shape = 'u8[131072]{0}', space=vmem, size = 0x20000, scoped, tag = 'input window, operand 3, single buffered']
    #allocation9 [shape = 's32[1]{0}', space=sflag, size = 0x4, scoped, tag = 'scoped memory for tpu_custom_call.1']
    #allocation10 [shape = 'u8[4096]{0}', space=vmem, size = 0x1000, scoped, tag = 'input window, operand 4, single buffered']
    #allocation11 [shape = 'u8[65536]{0}', space=vmem, size = 0x10000, scoped, tag = 'input window, operand 5, single buffered']
    #allocation12 [shape = 's32[1]{0}', space=sflag, size = 0x4, scoped, tag = 'scoped memory for tpu_custom_call.1']
    #allocation13 [shape = 'u8[4096]{0}', space=vmem, size = 0x1000, scoped, tag = 'output window, operand 0, single buffered']
    %11 = vsyncpa [#allocation3], 0
    %12 = vsyncpa [#allocation6], 0
    %13 = vsyncpa [#allocation9], 0
    %14 = vsyncpa [#allocation12], 0
    %15 = vsyncpa [#allocation4], 0
    // Predicated region
    $region2: #{tpu_custom_call.1} parent=1 // pred_check
      _
    $region3: #{tpu_custom_call.1} parent=1 // pred_check_branch
      %17 = sbr.rel (0) target = $region5
    $region4: #{tpu_custom_call.1} parent=1 // pred_region
      %19 = vsyncadd [#allocation3], 64
      %s20 = sshll.u32 %s0, 4
      %s21 = int_to_ptr.hbm [resolvable:$true] %s20
      %s22 = sshll.u32 [#allocation2], 4
      %s23 = int_to_ptr.vmem [resolvable:$true] %s22
      %28 = dma.hbm_to_vmem [thread:$0]  %s21, 64, %s23, [#allocation3], 64, 64, 4
    $region5: #{tpu_custom_call.1} parent=1 // pred_fallthru
      _
    // Predicated region
    $region6: #{tpu_custom_call.1} parent=1 // pred_check
      _
    $region7: #{tpu_custom_call.1} parent=1 // pred_check_branch
      %30 = sbr.rel (0) target = $region9
    $region8: #{tpu_custom_call.1} parent=1 // pred_region
      %32 = vsyncadd [#allocation6], 0
      %s33 = sshll.u32 %s1, 4
      %s34 = int_to_ptr.hbm [resolvable:$true] %s33
      %s35 = sshll.u32 [#allocation5], 4
      %s36 = int_to_ptr.vmem [resolvable:$true] %s35
      %41 = dma.hbm_to_vmem [thread:$0]  %s34, 4096, %s36, [#allocation6], 256, 256, 16
    $region9: #{tpu_custom_call.1} parent=1 // pred_fallthru
      _
    // Predicated region
    $region10: #{tpu_custom_call.1} parent=1 // pred_check
      _
    $region11: #{tpu_custom_call.1} parent=1 // pred_check_branch
      %43 = sbr.rel (0) target = $region13
    $region12: #{tpu_custom_call.1} parent=1 // pred_region
      %45 = vsyncadd [#allocation6], 0
      %s47 = sshll.u32 %s2, 4
      %s48 = int_to_ptr.hbm [resolvable:$true] %s47
      %s49 = sshll.u32 [#allocation7], 4
      %s50 = int_to_ptr.vmem [resolvable:$true] %s49
      %52 = dma.hbm_to_vmem [thread:$0]  %s48, 32, %s50, [#allocation6]
    $region13: #{tpu_custom_call.1} parent=1 // pred_fallthru
      _
    // Predicated region
    $region14: #{tpu_custom_call.1} parent=1 // pred_check
      _
    $region15: #{tpu_custom_call.1} parent=1 // pred_check_branch
      %54 = sbr.rel (0) target = $region17
    $region16: #{tpu_custom_call.1} parent=1 // pred_region
      %56 = vsyncadd [#allocation9], 0
      %s57 = sshll.u32 %s3, 4
      %s58 = int_to_ptr.hbm [resolvable:$true] %s57
      %s59 = sshll.u32 [#allocation8], 4
      %s60 = int_to_ptr.vmem [resolvable:$true] %s59
      %65 = dma.hbm_to_vmem [thread:$0]  %s58, 4096, %s60, [#allocation9], 128, 128, 8
    $region17: #{tpu_custom_call.1} parent=1 // pred_fallthru
      _
    // Predicated region
    $region18: #{tpu_custom_call.1} parent=1 // pred_check
      _
    $region19: #{tpu_custom_call.1} parent=1 // pred_check_branch
      %67 = sbr.rel (0) target = $region21
    $region20: #{tpu_custom_call.1} parent=1 // pred_region
      %69 = vsyncadd [#allocation9], 0
      %s71 = sshll.u32 %s4, 4
      %s72 = int_to_ptr.hbm [resolvable:$true] %s71
      %s73 = sshll.u32 [#allocation10], 4
      %s74 = int_to_ptr.vmem [resolvable:$true] %s73
      %76 = dma.hbm_to_vmem [thread:$0]  %s72, 128, %s74, [#allocation9]
    $region21: #{tpu_custom_call.1} parent=1 // pred_fallthru
      _
    // Predicated region
    $region22: #{tpu_custom_call.1} parent=1 // pred_check
      _
    $region23: #{tpu_custom_call.1} parent=1 // pred_check_branch
      %78 = sbr.rel (0) target = $region25
    $region24: #{tpu_custom_call.1} parent=1 // pred_region
      %80 = vsyncadd [#allocation12], 0
      %s81 = sshll.u32 %s5, 4
      %s82 = int_to_ptr.hbm [resolvable:$true] %s81
      %s83 = sshll.u32 [#allocation11], 4
      %s84 = int_to_ptr.vmem [resolvable:$true] %s83
      %89 = dma.hbm_to_vmem [thread:$0]  %s82, 2048, %s84, [#allocation12], 128, 128, 8
    $region25: #{tpu_custom_call.1} parent=1 // pred_fallthru
      _
    // Predicated region
    $region26: #{tpu_custom_call.1} parent=1 // pred_check
      _
    $region27: #{tpu_custom_call.1} parent=1 // pred_check_branch
      %91 = sbr.rel (0) target = $region29
    $region28: #{tpu_custom_call.1} parent=1 // pred_region
      %93 = dma.done [#allocation3], 128
    $region29: #{tpu_custom_call.1} parent=1 // pred_fallthru
      _
    // Predicated region
    $region30: #{tpu_custom_call.1} parent=1 // pred_check
      _
    $region31: #{tpu_custom_call.1} parent=1 // pred_check_branch
      %95 = sbr.rel (0) target = $region33
    $region32: #{tpu_custom_call.1} parent=1 // pred_region
      %97 = dma.done [#allocation6], 4096
    $region33: #{tpu_custom_call.1} parent=1 // pred_fallthru
      _
    // Predicated region
    $region34: #{tpu_custom_call.1} parent=1 // pred_check
      _
    $region35: #{tpu_custom_call.1} parent=1 // pred_check_branch
      %99 = sbr.rel (0) target = $region37
    $region36: #{tpu_custom_call.1} parent=1 // pred_region
      %101 = dma.done [#allocation6], 32
    $region37: #{tpu_custom_call.1} parent=1 // pred_fallthru
      _
    // Predicated region
    $region38: #{tpu_custom_call.1} parent=1 // pred_check
      _
    $region39: #{tpu_custom_call.1} parent=1 // pred_check_branch
      %103 = sbr.rel (0) target = $region41
    $region40: #{tpu_custom_call.1} parent=1 // pred_region
      %105 = dma.done [#allocation9], 4096
    $region41: #{tpu_custom_call.1} parent=1 // pred_fallthru
      _
    // Predicated region
    $region42: #{tpu_custom_call.1} parent=1 // pred_check
      _
    $region43: #{tpu_custom_call.1} parent=1 // pred_check_branch
      %107 = sbr.rel (0) target = $region45
    $region44: #{tpu_custom_call.1} parent=1 // pred_region
      %109 = dma.done [#allocation9], 128
    $region45: #{tpu_custom_call.1} parent=1 // pred_fallthru
      _
    // Predicated region
    $region46: #{tpu_custom_call.1} parent=1 // pred_check
      _
    $region47: #{tpu_custom_call.1} parent=1 // pred_check_branch
      %111 = sbr.rel (0) target = $region49
    $region48: #{tpu_custom_call.1} parent=1 // pred_region
      %113 = dma.done [#allocation12], 2048
    $region49: #{tpu_custom_call.1} parent=1 // pred_fallthru
      _
    %v114 = vld [vmem:[#allocation2] sm:$0xff]
    %v115 = vld [vmem:[#allocation5] sm:$0xff]
    %v116 = vld [vmem:[#allocation5 + $0x8] sm:$0xff]
    %v117 = vld [vmem:[#allocation5 + $0x10] sm:$0xff]
    %v118 = vld [vmem:[#allocation5 + $0x18] sm:$0xff]
    %v119 = vld [vmem:[#allocation5 + $0x20] sm:$0xff]
    %v120 = vld [vmem:[#allocation5 + $0x28] sm:$0xff]
    %v121 = vld [vmem:[#allocation5 + $0x30] sm:$0xff]
    %v122 = vld [vmem:[#allocation5 + $0x38] sm:$0xff]
    %v123 = vld [vmem:[#allocation5 + $0x40] sm:$0xff]
    %v124 = vld [vmem:[#allocation5 + $0x48] sm:$0xff]
    %v125 = vld [vmem:[#allocation5 + $0x50] sm:$0xff]
    %v126 = vld [vmem:[#allocation5 + $0x58] sm:$0xff]
    %v127 = vld [vmem:[#allocation5 + $0x60] sm:$0xff]
    %v128 = vld [vmem:[#allocation5 + $0x68] sm:$0xff]
    %v129 = vld [vmem:[#allocation5 + $0x70] sm:$0xff]
    %v130 = vld [vmem:[#allocation5 + $0x78] sm:$0xff]
    %v131 = vld [vmem:[#allocation5 + $0x80] sm:$0xff]
    %v132 = vld [vmem:[#allocation5 + $0x88] sm:$0xff]
    %v133 = vld [vmem:[#allocation5 + $0x90] sm:$0xff]
    %v134 = vld [vmem:[#allocation5 + $0x98] sm:$0xff]
    %v135 = vld [vmem:[#allocation5 + $0xa0] sm:$0xff]
    %v136 = vld [vmem:[#allocation5 + $0xa8] sm:$0xff]
    %v137 = vld [vmem:[#allocation5 + $0xb0] sm:$0xff]
    %v138 = vld [vmem:[#allocation5 + $0xb8] sm:$0xff]
    %v139 = vld [vmem:[#allocation5 + $0xc0] sm:$0xff]
    %v140 = vld [vmem:[#allocation5 + $0xc8] sm:$0xff]
    %v141 = vld [vmem:[#allocation5 + $0xd0] sm:$0xff]
    %v142 = vld [vmem:[#allocation5 + $0xd8] sm:$0xff]
    %v143 = vld [vmem:[#allocation5 + $0xe0] sm:$0xff]
    %v144 = vld [vmem:[#allocation5 + $0xe8] sm:$0xff]
    %v145 = vld [vmem:[#allocation5 + $0xf0] sm:$0xff]
    %v146 = vld [vmem:[#allocation5 + $0xf8] sm:$0xff]
    %v147 = vld [vmem:[#allocation7] sm:$0x3]
    %v149 = vperm.slane %v147, 0
    %v150 = vperm.slane %v147, 1
    %v153 = vand.u32 %v145, 4294901760
    %154 = vmatpush.msra.mxu0 %v153
    %v155 = vand.u32 %v143, 4294901760
    %156 = vmatpush.msra.mxu0 %v155
    %v157 = vand.u32 %v141, 4294901760
    %158 = vmatpush.msra.mxu0 %v157
    %v159 = vand.u32 %v139, 4294901760
    %160 = vmatpush.msra.mxu0 %v159
    %v161 = vand.u32 %v137, 4294901760
    %162 = vmatpush.msra.mxu0 %v161
    %v163 = vand.u32 %v135, 4294901760
    %164 = vmatpush.msra.mxu0 %v163
    %v165 = vand.u32 %v133, 4294901760
    %166 = vmatpush.msra.mxu0 %v165
    %v167 = vand.u32 %v131, 4294901760
    %168 = vmatpush.msra.mxu0 %v167
    %v169 = vand.u32 %v129, 4294901760
    %170 = vmatpush.msra.mxu0 %v169
    %v171 = vand.u32 %v127, 4294901760
    %172 = vmatpush.msra.mxu0 %v171
    %v173 = vand.u32 %v125, 4294901760
    %174 = vmatpush.msra.mxu0 %v173
    %v175 = vand.u32 %v123, 4294901760
    %176 = vmatpush.msra.mxu0 %v175
    %v177 = vand.u32 %v121, 4294901760
    %178 = vmatpush.msra.mxu0 %v177
    %v179 = vand.u32 %v119, 4294901760
    %180 = vmatpush.msra.mxu0 %v179
    %v181 = vand.u32 %v117, 4294901760
    %182 = vmatpush.msra.mxu0 %v181
    %v183 = vand.u32 %v115, 4294901760
    %184 = vmatpush.msra.mxu0 %v183
    %v185 = vand.u32 %v114, 4294901760
    %v186 = vsub.f32 %v114, %v185
    %v187 = vand.u32 %v186, 4294901760
    %v188 = vsub.f32 %v186, %v187
    %v189 = vand.u32 %v188, 4294901760
    %190 = vmatmul.f32.gmra.mxu0 %v189
    %v191 = vpop.f32.mrf.mxu0
    %v192 = vadd.f32 %v149, %v191
    %193 = vdwg.mxu0
    %v194 = vand.u32 %v145, 4294901760
    %v195 = vsub.f32 %v145, %v194
    %v196 = vand.u32 %v195, 4294901760
    %v197 = vsub.f32 %v195, %v196
    %v198 = vand.u32 %v197, 4294901760
    %199 = vmatpush.msra.mxu0 %v198
    %v200 = vand.u32 %v143, 4294901760
    %v201 = vsub.f32 %v143, %v200
    %v202 = vand.u32 %v201, 4294901760
    %v203 = vsub.f32 %v201, %v202
    %v204 = vand.u32 %v203, 4294901760
    %205 = vmatpush.msra.mxu0 %v204
    %v206 = vand.u32 %v141, 4294901760
    %v207 = vsub.f32 %v141, %v206
    %v208 = vand.u32 %v207, 4294901760
    %v209 = vsub.f32 %v207, %v208
    %v210 = vand.u32 %v209, 4294901760
    %211 = vmatpush.msra.mxu0 %v210
    %v212 = vand.u32 %v139, 4294901760
    %v213 = vsub.f32 %v139, %v212
    %v214 = vand.u32 %v213, 4294901760
    %v215 = vsub.f32 %v213, %v214
    %v216 = vand.u32 %v215, 4294901760
    %217 = vmatpush.msra.mxu0 %v216
    %v218 = vand.u32 %v137, 4294901760
    %v219 = vsub.f32 %v137, %v218
    %v220 = vand.u32 %v219, 4294901760
    %v221 = vsub.f32 %v219, %v220
    %v222 = vand.u32 %v221, 4294901760
    %223 = vmatpush.msra.mxu0 %v222
    %v224 = vand.u32 %v135, 4294901760
    %v225 = vsub.f32 %v135, %v224
    %v226 = vand.u32 %v225, 4294901760
    %v227 = vsub.f32 %v225, %v226
    %v228 = vand.u32 %v227, 4294901760
    %229 = vmatpush.msra.mxu0 %v228
    %v230 = vand.u32 %v133, 4294901760
    %v231 = vsub.f32 %v133, %v230
    %v232 = vand.u32 %v231, 4294901760
    %v233 = vsub.f32 %v231, %v232
    %v234 = vand.u32 %v233, 4294901760
    %235 = vmatpush.msra.mxu0 %v234
    %v236 = vand.u32 %v131, 4294901760
    %v237 = vsub.f32 %v131, %v236
    %v238 = vand.u32 %v237, 4294901760
    %v239 = vsub.f32 %v237, %v238
    %v240 = vand.u32 %v239, 4294901760
    %241 = vmatpush.msra.mxu0 %v240
    %v242 = vand.u32 %v129, 4294901760
    %v243 = vsub.f32 %v129, %v242
    %v244 = vand.u32 %v243, 4294901760
    %v245 = vsub.f32 %v243, %v244
    %v246 = vand.u32 %v245, 4294901760
    %247 = vmatpush.msra.mxu0 %v246
    %v248 = vand.u32 %v127, 4294901760
    %v249 = vsub.f32 %v127, %v248
    %v250 = vand.u32 %v249, 4294901760
    %v251 = vsub.f32 %v249, %v250
    %v252 = vand.u32 %v251, 4294901760
    %253 = vmatpush.msra.mxu0 %v252
    %v254 = vand.u32 %v125, 4294901760
    %v255 = vsub.f32 %v125, %v254
    %v256 = vand.u32 %v255, 4294901760
    %v257 = vsub.f32 %v255, %v256
    %v258 = vand.u32 %v257, 4294901760
    %259 = vmatpush.msra.mxu0 %v258
    %v260 = vand.u32 %v123, 4294901760
    %v261 = vsub.f32 %v123, %v260
    %v262 = vand.u32 %v261, 4294901760
    %v263 = vsub.f32 %v261, %v262
    %v264 = vand.u32 %v263, 4294901760
    %265 = vmatpush.msra.mxu0 %v264
    %v266 = vand.u32 %v121, 4294901760
    %v267 = vsub.f32 %v121, %v266
    %v268 = vand.u32 %v267, 4294901760
    %v269 = vsub.f32 %v267, %v268
    %v270 = vand.u32 %v269, 4294901760
    %271 = vmatpush.msra.mxu0 %v270
    %v272 = vand.u32 %v119, 4294901760
    %v273 = vsub.f32 %v119, %v272
    %v274 = vand.u32 %v273, 4294901760
    %v275 = vsub.f32 %v273, %v274
    %v276 = vand.u32 %v275, 4294901760
    %277 = vmatpush.msra.mxu0 %v276
    %v278 = vand.u32 %v117, 4294901760
    %v279 = vsub.f32 %v117, %v278
    %v280 = vand.u32 %v279, 4294901760
    %v281 = vsub.f32 %v279, %v280
    %v282 = vand.u32 %v281, 4294901760
    %283 = vmatpush.msra.mxu0 %v282
    %v284 = vand.u32 %v115, 4294901760
    %v285 = vsub.f32 %v115, %v284
    %v286 = vand.u32 %v285, 4294901760
    %v287 = vsub.f32 %v285, %v286
    %v288 = vand.u32 %v287, 4294901760
    %289 = vmatpush.msra.mxu0 %v288
    %v290 = vand.u32 %v114, 4294901760
    %291 = vmatmul.f32.gmra.mxu0 %v290
    %v292 = vpop.f32.mrf.mxu0
    %v293 = vadd.f32 %v192, %v292
    %294 = vdwg.mxu0
    %v295 = vand.u32 %v145, 4294901760
    %v296 = vsub.f32 %v145, %v295
    %297 = vmatpush.msra.mxu0 %v296
    %v298 = vand.u32 %v143, 4294901760
    %v299 = vsub.f32 %v143, %v298
    %300 = vmatpush.msra.mxu0 %v299
    %v301 = vand.u32 %v141, 4294901760
    %v302 = vsub.f32 %v141, %v301
    %303 = vmatpush.msra.mxu0 %v302
    %v304 = vand.u32 %v139, 4294901760
    %v305 = vsub.f32 %v139, %v304
    %306 = vmatpush.msra.mxu0 %v305
    %v307 = vand.u32 %v137, 4294901760
    %v308 = vsub.f32 %v137, %v307
    %309 = vmatpush.msra.mxu0 %v308
    %v310 = vand.u32 %v135, 4294901760
    %v311 = vsub.f32 %v135, %v310
    %312 = vmatpush.msra.mxu0 %v311
    %v313 = vand.u32 %v133, 4294901760
    %v314 = vsub.f32 %v133, %v313
    %315 = vmatpush.msra.mxu0 %v314
    %v316 = vand.u32 %v131, 4294901760
    %v317 = vsub.f32 %v131, %v316
    %318 = vmatpush.msra.mxu0 %v317
    %v319 = vand.u32 %v129, 4294901760
    %v320 = vsub.f32 %v129, %v319
    %321 = vmatpush.msra.mxu0 %v320
    %v322 = vand.u32 %v127, 4294901760
    %v323 = vsub.f32 %v127, %v322
    %324 = vmatpush.msra.mxu0 %v323
    %v325 = vand.u32 %v125, 4294901760
    %v326 = vsub.f32 %v125, %v325
    %327 = vmatpush.msra.mxu0 %v326
    %v328 = vand.u32 %v123, 4294901760
    %v329 = vsub.f32 %v123, %v328
    %330 = vmatpush.msra.mxu0 %v329
    %v331 = vand.u32 %v121, 4294901760
    %v332 = vsub.f32 %v121, %v331
    %333 = vmatpush.msra.mxu0 %v332
    %v334 = vand.u32 %v119, 4294901760
    %v335 = vsub.f32 %v119, %v334
    %336 = vmatpush.msra.mxu0 %v335
    %v337 = vand.u32 %v117, 4294901760
    %v338 = vsub.f32 %v117, %v337
    %339 = vmatpush.msra.mxu0 %v338
    %v340 = vand.u32 %v115, 4294901760
    %v341 = vsub.f32 %v115, %v340
    %342 = vmatpush.msra.mxu0 %v341
    %v343 = vand.u32 %v114, 4294901760
    %v344 = vsub.f32 %v114, %v343
    %345 = vmatmul.f32.gmra.mxu0 %v344
    %v346 = vpop.f32.mrf.mxu0
    %v347 = vadd.f32 %v293, %v346
    %348 = vdwg.mxu0
    %v349 = vand.u32 %v145, 4294901760
    %350 = vmatpush.msra.mxu0 %v349
    %v351 = vand.u32 %v143, 4294901760
    %352 = vmatpush.msra.mxu0 %v351
    %v353 = vand.u32 %v141, 4294901760
    %354 = vmatpush.msra.mxu0 %v353
    %v355 = vand.u32 %v139, 4294901760
    %356 = vmatpush.msra.mxu0 %v355
    %v357 = vand.u32 %v137, 4294901760
    %358 = vmatpush.msra.mxu0 %v357
    %v359 = vand.u32 %v135, 4294901760
    %360 = vmatpush.msra.mxu0 %v359
    %v361 = vand.u32 %v133, 4294901760
    %362 = vmatpush.msra.mxu0 %v361
    %v363 = vand.u32 %v131, 4294901760
    %364 = vmatpush.msra.mxu0 %v363
    %v365 = vand.u32 %v129, 4294901760
    %366 = vmatpush.msra.mxu0 %v365
    %v367 = vand.u32 %v127, 4294901760
    %368 = vmatpush.msra.mxu0 %v367
    %v369 = vand.u32 %v125, 4294901760
    %370 = vmatpush.msra.mxu0 %v369
    %v371 = vand.u32 %v123, 4294901760
    %372 = vmatpush.msra.mxu0 %v371
    %v373 = vand.u32 %v121, 4294901760
    %374 = vmatpush.msra.mxu0 %v373
    %v375 = vand.u32 %v119, 4294901760
    %376 = vmatpush.msra.mxu0 %v375
    %v377 = vand.u32 %v117, 4294901760
    %378 = vmatpush.msra.mxu0 %v377
    %v379 = vand.u32 %v115, 4294901760
    %380 = vmatpush.msra.mxu0 %v379
    %v381 = vand.u32 %v114, 4294901760
    %v382 = vsub.f32 %v114, %v381
    %v383 = vand.u32 %v382, 4294901760
    %384 = vmatmul.f32.gmra.mxu0 %v383
    %v385 = vpop.f32.mrf.mxu0
    %v386 = vadd.f32 %v347, %v385
    %387 = vdwg.mxu0
    %v388 = vand.u32 %v145, 4294901760
    %v389 = vsub.f32 %v145, %v388
    %v390 = vand.u32 %v389, 4294901760
    %391 = vmatpush.msra.mxu0 %v390
    %v392 = vand.u32 %v143, 4294901760
    %v393 = vsub.f32 %v143, %v392
    %v394 = vand.u32 %v393, 4294901760
    %395 = vmatpush.msra.mxu0 %v394
    %v396 = vand.u32 %v141, 4294901760
    %v397 = vsub.f32 %v141, %v396
    %v398 = vand.u32 %v397, 4294901760
    %399 = vmatpush.msra.mxu0 %v398
    %v400 = vand.u32 %v139, 4294901760
    %v401 = vsub.f32 %v139, %v400
    %v402 = vand.u32 %v401, 4294901760
    %403 = vmatpush.msra.mxu0 %v402
    %v404 = vand.u32 %v137, 4294901760
    %v405 = vsub.f32 %v137, %v404
    %v406 = vand.u32 %v405, 4294901760
    %407 = vmatpush.msra.mxu0 %v406
    %v408 = vand.u32 %v135, 4294901760
    %v409 = vsub.f32 %v135, %v408
    %v410 = vand.u32 %v409, 4294901760
    %411 = vmatpush.msra.mxu0 %v410
    %v412 = vand.u32 %v133, 4294901760
    %v413 = vsub.f32 %v133, %v412
    %v414 = vand.u32 %v413, 4294901760
    %415 = vmatpush.msra.mxu0 %v414
    %v416 = vand.u32 %v131, 4294901760
    %v417 = vsub.f32 %v131, %v416
    %v418 = vand.u32 %v417, 4294901760
    %419 = vmatpush.msra.mxu0 %v418
    %v420 = vand.u32 %v129, 4294901760
    %v421 = vsub.f32 %v129, %v420
    %v422 = vand.u32 %v421, 4294901760
    %423 = vmatpush.msra.mxu0 %v422
    %v424 = vand.u32 %v127, 4294901760
    %v425 = vsub.f32 %v127, %v424
    %v426 = vand.u32 %v425, 4294901760
    %427 = vmatpush.msra.mxu0 %v426
    %v428 = vand.u32 %v125, 4294901760
    %v429 = vsub.f32 %v125, %v428
    %v430 = vand.u32 %v429, 4294901760
    %431 = vmatpush.msra.mxu0 %v430
    %v432 = vand.u32 %v123, 4294901760
    %v433 = vsub.f32 %v123, %v432
    %v434 = vand.u32 %v433, 4294901760
    %435 = vmatpush.msra.mxu0 %v434
    %v436 = vand.u32 %v121, 4294901760
    %v437 = vsub.f32 %v121, %v436
    %v438 = vand.u32 %v437, 4294901760
    %439 = vmatpush.msra.mxu0 %v438
    %v440 = vand.u32 %v119, 4294901760
    %v441 = vsub.f32 %v119, %v440
    %v442 = vand.u32 %v441, 4294901760
    %443 = vmatpush.msra.mxu0 %v442
    %v444 = vand.u32 %v117, 4294901760
    %v445 = vsub.f32 %v117, %v444
    %v446 = vand.u32 %v445, 4294901760
    %447 = vmatpush.msra.mxu0 %v446
    %v448 = vand.u32 %v115, 4294901760
    %v449 = vsub.f32 %v115, %v448
    %v450 = vand.u32 %v449, 4294901760
    %451 = vmatpush.msra.mxu0 %v450
    %v452 = vand.u32 %v114, 4294901760
    %453 = vmatmul.f32.gmra.mxu0 %v452
    %v454 = vpop.f32.mrf.mxu0
    %v455 = vadd.f32 %v386, %v454
    %456 = vdwg.mxu0
    %v457 = vand.u32 %v145, 4294901760
    %458 = vmatpush.msra.mxu0 %v457
    %v459 = vand.u32 %v143, 4294901760
    %460 = vmatpush.msra.mxu0 %v459
    %v461 = vand.u32 %v141, 4294901760
    %462 = vmatpush.msra.mxu0 %v461
    %v463 = vand.u32 %v139, 4294901760
    %464 = vmatpush.msra.mxu0 %v463
    %v465 = vand.u32 %v137, 4294901760
    %466 = vmatpush.msra.mxu0 %v465
    %v467 = vand.u32 %v135, 4294901760
    %468 = vmatpush.msra.mxu0 %v467
    %v469 = vand.u32 %v133, 4294901760
    %470 = vmatpush.msra.mxu0 %v469
    %v471 = vand.u32 %v131, 4294901760
    %472 = vmatpush.msra.mxu0 %v471
    %v473 = vand.u32 %v129, 4294901760
    %474 = vmatpush.msra.mxu0 %v473
    %v475 = vand.u32 %v127, 4294901760
    %476 = vmatpush.msra.mxu0 %v475
    %v477 = vand.u32 %v125, 4294901760
    %478 = vmatpush.msra.mxu0 %v477
    %v479 = vand.u32 %v123, 4294901760
    %480 = vmatpush.msra.mxu0 %v479
    %v481 = vand.u32 %v121, 4294901760
    %482 = vmatpush.msra.mxu0 %v481
    %v483 = vand.u32 %v119, 4294901760
    %484 = vmatpush.msra.mxu0 %v483
    %v485 = vand.u32 %v117, 4294901760
    %486 = vmatpush.msra.mxu0 %v485
    %v487 = vand.u32 %v115, 4294901760
    %488 = vmatpush.msra.mxu0 %v487
    %v489 = vand.u32 %v114, 4294901760
    %490 = vmatmul.f32.gmra.mxu0 %v489
    %v491 = vpop.f32.mrf.mxu0
    %v492 = vadd.f32 %v455, %v491
    %493 = vdwg.mxu0
    %v494 = vand.u32 %v146, 4294901760
    %495 = vmatpush.msra.mxu0 %v494
    %v496 = vand.u32 %v144, 4294901760
    %497 = vmatpush.msra.mxu0 %v496
    %v498 = vand.u32 %v142, 4294901760
    %499 = vmatpush.msra.mxu0 %v498
    %v500 = vand.u32 %v140, 4294901760
    %501 = vmatpush.msra.mxu0 %v500
    %v502 = vand.u32 %v138, 4294901760
    %503 = vmatpush.msra.mxu0 %v502
    %v504 = vand.u32 %v136, 4294901760
    %505 = vmatpush.msra.mxu0 %v504
    %v506 = vand.u32 %v134, 4294901760
    %507 = vmatpush.msra.mxu0 %v506
    %v508 = vand.u32 %v132, 4294901760
    %509 = vmatpush.msra.mxu0 %v508
    %v510 = vand.u32 %v130, 4294901760
    %511 = vmatpush.msra.mxu0 %v510
    %v512 = vand.u32 %v128, 4294901760
    %513 = vmatpush.msra.mxu0 %v512
    %v514 = vand.u32 %v126, 4294901760
    %515 = vmatpush.msra.mxu0 %v514
    %v516 = vand.u32 %v124, 4294901760
    %517 = vmatpush.msra.mxu0 %v516
    %v518 = vand.u32 %v122, 4294901760
    %519 = vmatpush.msra.mxu0 %v518
    %v520 = vand.u32 %v120, 4294901760
    %521 = vmatpush.msra.mxu0 %v520
    %v522 = vand.u32 %v118, 4294901760
    %523 = vmatpush.msra.mxu0 %v522
    %v524 = vand.u32 %v116, 4294901760
    %525 = vmatpush.msra.mxu0 %v524
    %v526 = vand.u32 %v114, 4294901760
    %v527 = vsub.f32 %v114, %v526
    %v528 = vand.u32 %v527, 4294901760
    %v529 = vsub.f32 %v527, %v528
    %v530 = vand.u32 %v529, 4294901760
    %531 = vmatmul.f32.gmra.mxu0 %v530
    %v532 = vpop.f32.mrf.mxu0
    %v533 = vadd.f32 %v150, %v532
    %534 = vdwg.mxu0
    %v535 = vand.u32 %v146, 4294901760
    %v536 = vsub.f32 %v146, %v535
    %v537 = vand.u32 %v536, 4294901760
    %v538 = vsub.f32 %v536, %v537
    %v539 = vand.u32 %v538, 4294901760
    %540 = vmatpush.msra.mxu0 %v539
    %v541 = vand.u32 %v144, 4294901760
    %v542 = vsub.f32 %v144, %v541
    %v543 = vand.u32 %v542, 4294901760
    %v544 = vsub.f32 %v542, %v543
    %v545 = vand.u32 %v544, 4294901760
    %546 = vmatpush.msra.mxu0 %v545
    %v547 = vand.u32 %v142, 4294901760
    %v548 = vsub.f32 %v142, %v547
    %v549 = vand.u32 %v548, 4294901760
    %v550 = vsub.f32 %v548, %v549
    %v551 = vand.u32 %v550, 4294901760
    %552 = vmatpush.msra.mxu0 %v551
    %v553 = vand.u32 %v140, 4294901760
    %v554 = vsub.f32 %v140, %v553
    %v555 = vand.u32 %v554, 4294901760
    %v556 = vsub.f32 %v554, %v555
    %v557 = vand.u32 %v556, 4294901760
    %558 = vmatpush.msra.mxu0 %v557
    %v559 = vand.u32 %v138, 4294901760
    %v560 = vsub.f32 %v138, %v559
    %v561 = vand.u32 %v560, 4294901760
    %v562 = vsub.f32 %v560, %v561
    %v563 = vand.u32 %v562, 4294901760
    %564 = vmatpush.msra.mxu0 %v563
    %v565 = vand.u32 %v136, 4294901760
    %v566 = vsub.f32 %v136, %v565
    %v567 = vand.u32 %v566, 4294901760
    %v568 = vsub.f32 %v566, %v567
    %v569 = vand.u32 %v568, 4294901760
    %570 = vmatpush.msra.mxu0 %v569
    %v571 = vand.u32 %v134, 4294901760
    %v572 = vsub.f32 %v134, %v571
    %v573 = vand.u32 %v572, 4294901760
    %v574 = vsub.f32 %v572, %v573
    %v575 = vand.u32 %v574, 4294901760
    %576 = vmatpush.msra.mxu0 %v575
    %v577 = vand.u32 %v132, 4294901760
    %v578 = vsub.f32 %v132, %v577
    %v579 = vand.u32 %v578, 4294901760
    %v580 = vsub.f32 %v578, %v579
    %v581 = vand.u32 %v580, 4294901760
    %582 = vmatpush.msra.mxu0 %v581
    %v583 = vand.u32 %v130, 4294901760
    %v584 = vsub.f32 %v130, %v583
    %v585 = vand.u32 %v584, 4294901760
    %v586 = vsub.f32 %v584, %v585
    %v587 = vand.u32 %v586, 4294901760
    %588 = vmatpush.msra.mxu0 %v587
    %v589 = vand.u32 %v128, 4294901760
    %v590 = vsub.f32 %v128, %v589
    %v591 = vand.u32 %v590, 4294901760
    %v592 = vsub.f32 %v590, %v591
    %v593 = vand.u32 %v592, 4294901760
    %594 = vmatpush.msra.mxu0 %v593
    %v595 = vand.u32 %v126, 4294901760
    %v596 = vsub.f32 %v126, %v595
    %v597 = vand.u32 %v596, 4294901760
    %v598 = vsub.f32 %v596, %v597
    %v599 = vand.u32 %v598, 4294901760
    %600 = vmatpush.msra.mxu0 %v599
    %v601 = vand.u32 %v124, 4294901760
    %v602 = vsub.f32 %v124, %v601
    %v603 = vand.u32 %v602, 4294901760
    %v604 = vsub.f32 %v602, %v603
    %v605 = vand.u32 %v604, 4294901760
    %606 = vmatpush.msra.mxu0 %v605
    %v607 = vand.u32 %v122, 4294901760
    %v608 = vsub.f32 %v122, %v607
    %v609 = vand.u32 %v608, 4294901760
    %v610 = vsub.f32 %v608, %v609
    %v611 = vand.u32 %v610, 4294901760
    %612 = vmatpush.msra.mxu0 %v611
    %v613 = vand.u32 %v120, 4294901760
    %v614 = vsub.f32 %v120, %v613
    %v615 = vand.u32 %v614, 4294901760
    %v616 = vsub.f32 %v614, %v615
    %v617 = vand.u32 %v616, 4294901760
    %618 = vmatpush.msra.mxu0 %v617
    %v619 = vand.u32 %v118, 4294901760
    %v620 = vsub.f32 %v118, %v619
    %v621 = vand.u32 %v620, 4294901760
    %v622 = vsub.f32 %v620, %v621
    %v623 = vand.u32 %v622, 4294901760
    %624 = vmatpush.msra.mxu0 %v623
    %v625 = vand.u32 %v116, 4294901760
    %v626 = vsub.f32 %v116, %v625
    %v627 = vand.u32 %v626, 4294901760
    %v628 = vsub.f32 %v626, %v627
    %v629 = vand.u32 %v628, 4294901760
    %630 = vmatpush.msra.mxu0 %v629
    %v631 = vand.u32 %v114, 4294901760
    %632 = vmatmul.f32.gmra.mxu0 %v631
    %v633 = vpop.f32.mrf.mxu0
    %v634 = vadd.f32 %v533, %v633
    %635 = vdwg.mxu0
    %v636 = vand.u32 %v146, 4294901760
    %v637 = vsub.f32 %v146, %v636
    %638 = vmatpush.msra.mxu0 %v637
    %v639 = vand.u32 %v144, 4294901760
    %v640 = vsub.f32 %v144, %v639
    %641 = vmatpush.msra.mxu0 %v640
    %v642 = vand.u32 %v142, 4294901760
    %v643 = vsub.f32 %v142, %v642
    %644 = vmatpush.msra.mxu0 %v643
    %v645 = vand.u32 %v140, 4294901760
    %v646 = vsub.f32 %v140, %v645
    %647 = vmatpush.msra.mxu0 %v646
    %v648 = vand.u32 %v138, 4294901760
    %v649 = vsub.f32 %v138, %v648
    %650 = vmatpush.msra.mxu0 %v649
    %v651 = vand.u32 %v136, 4294901760
    %v652 = vsub.f32 %v136, %v651
    %653 = vmatpush.msra.mxu0 %v652
    %v654 = vand.u32 %v134, 4294901760
    %v655 = vsub.f32 %v134, %v654
    %656 = vmatpush.msra.mxu0 %v655
    %v657 = vand.u32 %v132, 4294901760
    %v658 = vsub.f32 %v132, %v657
    %659 = vmatpush.msra.mxu0 %v658
    %v660 = vand.u32 %v130, 4294901760
    %v661 = vsub.f32 %v130, %v660
    %662 = vmatpush.msra.mxu0 %v661
    %v663 = vand.u32 %v128, 4294901760
    %v664 = vsub.f32 %v128, %v663
    %665 = vmatpush.msra.mxu0 %v664
    %v666 = vand.u32 %v126, 4294901760
    %v667 = vsub.f32 %v126, %v666
    %668 = vmatpush.msra.mxu0 %v667
    %v669 = vand.u32 %v124, 4294901760
    %v670 = vsub.f32 %v124, %v669
    %671 = vmatpush.msra.mxu0 %v670
    %v672 = vand.u32 %v122, 4294901760
    %v673 = vsub.f32 %v122, %v672
    %674 = vmatpush.msra.mxu0 %v673
    %v675 = vand.u32 %v120, 4294901760
    %v676 = vsub.f32 %v120, %v675
    %677 = vmatpush.msra.mxu0 %v676
    %v678 = vand.u32 %v118, 4294901760
    %v679 = vsub.f32 %v118, %v678
    %680 = vmatpush.msra.mxu0 %v679
    %v681 = vand.u32 %v116, 4294901760
    %v682 = vsub.f32 %v116, %v681
    %683 = vmatpush.msra.mxu0 %v682
    %v684 = vand.u32 %v114, 4294901760
    %v685 = vsub.f32 %v114, %v684
    %686 = vmatmul.f32.gmra.mxu0 %v685
    %v687 = vpop.f32.mrf.mxu0
    %v688 = vadd.f32 %v634, %v687
    %689 = vdwg.mxu0
    %v690 = vand.u32 %v146, 4294901760
    %691 = vmatpush.msra.mxu0 %v690
    %v692 = vand.u32 %v144, 4294901760
    %693 = vmatpush.msra.mxu0 %v692
    %v694 = vand.u32 %v142, 4294901760
    %695 = vmatpush.msra.mxu0 %v694
    %v696 = vand.u32 %v140, 4294901760
    %697 = vmatpush.msra.mxu0 %v696
    %v698 = vand.u32 %v138, 4294901760
    %699 = vmatpush.msra.mxu0 %v698
    %v700 = vand.u32 %v136, 4294901760
    %701 = vmatpush.msra.mxu0 %v700
    %v702 = vand.u32 %v134, 4294901760
    %703 = vmatpush.msra.mxu0 %v702
    %v704 = vand.u32 %v132, 4294901760
    %705 = vmatpush.msra.mxu0 %v704
    %v706 = vand.u32 %v130, 4294901760
    %707 = vmatpush.msra.mxu0 %v706
    %v708 = vand.u32 %v128, 4294901760
    %709 = vmatpush.msra.mxu0 %v708
    %v710 = vand.u32 %v126, 4294901760
    %711 = vmatpush.msra.mxu0 %v710
    %v712 = vand.u32 %v124, 4294901760
    %713 = vmatpush.msra.mxu0 %v712
    %v714 = vand.u32 %v122, 4294901760
    %715 = vmatpush.msra.mxu0 %v714
    %v716 = vand.u32 %v120, 4294901760
    %717 = vmatpush.msra.mxu0 %v716
    %v718 = vand.u32 %v118, 4294901760
    %719 = vmatpush.msra.mxu0 %v718
    %v720 = vand.u32 %v116, 4294901760
    %721 = vmatpush.msra.mxu0 %v720
    %v722 = vand.u32 %v114, 4294901760
    %v723 = vsub.f32 %v114, %v722
    %v724 = vand.u32 %v723, 4294901760
    %725 = vmatmul.f32.gmra.mxu0 %v724
    %v726 = vpop.f32.mrf.mxu0
    %v727 = vadd.f32 %v688, %v726
    %728 = vdwg.mxu0
    %v729 = vand.u32 %v146, 4294901760
    %v730 = vsub.f32 %v146, %v729
    %v731 = vand.u32 %v730, 4294901760
    %732 = vmatpush.msra.mxu0 %v731
    %v733 = vand.u32 %v144, 4294901760
    %v734 = vsub.f32 %v144, %v733
    %v735 = vand.u32 %v734, 4294901760
    %736 = vmatpush.msra.mxu0 %v735
    %v737 = vand.u32 %v142, 4294901760
    %v738 = vsub.f32 %v142, %v737
    %v739 = vand.u32 %v738, 4294901760
    %740 = vmatpush.msra.mxu0 %v739
    %v741 = vand.u32 %v140, 4294901760
    %v742 = vsub.f32 %v140, %v741
    %v743 = vand.u32 %v742, 4294901760
    %744 = vmatpush.msra.mxu0 %v743
    %v745 = vand.u32 %v138, 4294901760
    %v746 = vsub.f32 %v138, %v745
    %v747 = vand.u32 %v746, 4294901760
    %748 = vmatpush.msra.mxu0 %v747
    %v749 = vand.u32 %v136, 4294901760
    %v750 = vsub.f32 %v136, %v749
    %v751 = vand.u32 %v750, 4294901760
    %752 = vmatpush.msra.mxu0 %v751
    %v753 = vand.u32 %v134, 4294901760
    %v754 = vsub.f32 %v134, %v753
    %v755 = vand.u32 %v754, 4294901760
    %756 = vmatpush.msra.mxu0 %v755
    %v757 = vand.u32 %v132, 4294901760
    %v758 = vsub.f32 %v132, %v757
    %v759 = vand.u32 %v758, 4294901760
    %760 = vmatpush.msra.mxu0 %v759
    %v761 = vand.u32 %v130, 4294901760
    %v762 = vsub.f32 %v130, %v761
    %v763 = vand.u32 %v762, 4294901760
    %764 = vmatpush.msra.mxu0 %v763
    %v765 = vand.u32 %v128, 4294901760
    %v766 = vsub.f32 %v128, %v765
    %v767 = vand.u32 %v766, 4294901760
    %768 = vmatpush.msra.mxu0 %v767
    %v769 = vand.u32 %v126, 4294901760
    %v770 = vsub.f32 %v126, %v769
    %v771 = vand.u32 %v770, 4294901760
    %772 = vmatpush.msra.mxu0 %v771
    %v773 = vand.u32 %v124, 4294901760
    %v774 = vsub.f32 %v124, %v773
    %v775 = vand.u32 %v774, 4294901760
    %776 = vmatpush.msra.mxu0 %v775
    %v777 = vand.u32 %v122, 4294901760
    %v778 = vsub.f32 %v122, %v777
    %v779 = vand.u32 %v778, 4294901760
    %780 = vmatpush.msra.mxu0 %v779
    %v781 = vand.u32 %v120, 4294901760
    %v782 = vsub.f32 %v120, %v781
    %v783 = vand.u32 %v782, 4294901760
    %784 = vmatpush.msra.mxu0 %v783
    %v785 = vand.u32 %v118, 4294901760
    %v786 = vsub.f32 %v118, %v785
    %v787 = vand.u32 %v786, 4294901760
    %788 = vmatpush.msra.mxu0 %v787
    %v789 = vand.u32 %v116, 4294901760
    %v790 = vsub.f32 %v116, %v789
    %v791 = vand.u32 %v790, 4294901760
    %792 = vmatpush.msra.mxu0 %v791
    %v793 = vand.u32 %v114, 4294901760
    %794 = vmatmul.f32.gmra.mxu0 %v793
    %v795 = vpop.f32.mrf.mxu0
    %v796 = vadd.f32 %v727, %v795
    %797 = vdwg.mxu0
    %v798 = vand.u32 %v146, 4294901760
    %799 = vmatpush.msra.mxu0 %v798
    %v800 = vand.u32 %v144, 4294901760
    %801 = vmatpush.msra.mxu0 %v800
    %v802 = vand.u32 %v142, 4294901760
    %803 = vmatpush.msra.mxu0 %v802
    %v804 = vand.u32 %v140, 4294901760
    %805 = vmatpush.msra.mxu0 %v804
    %v806 = vand.u32 %v138, 4294901760
    %807 = vmatpush.msra.mxu0 %v806
    %v808 = vand.u32 %v136, 4294901760
    %809 = vmatpush.msra.mxu0 %v808
    %v810 = vand.u32 %v134, 4294901760
    %811 = vmatpush.msra.mxu0 %v810
    %v812 = vand.u32 %v132, 4294901760
    %813 = vmatpush.msra.mxu0 %v812
    %v814 = vand.u32 %v130, 4294901760
    %815 = vmatpush.msra.mxu0 %v814
    %v816 = vand.u32 %v128, 4294901760
    %817 = vmatpush.msra.mxu0 %v816
    %v818 = vand.u32 %v126, 4294901760
    %819 = vmatpush.msra.mxu0 %v818
    %v820 = vand.u32 %v124, 4294901760
    %821 = vmatpush.msra.mxu0 %v820
    %v822 = vand.u32 %v122, 4294901760
    %823 = vmatpush.msra.mxu0 %v822
    %v824 = vand.u32 %v120, 4294901760
    %825 = vmatpush.msra.mxu0 %v824
    %v826 = vand.u32 %v118, 4294901760
    %827 = vmatpush.msra.mxu0 %v826
    %v828 = vand.u32 %v116, 4294901760
    %829 = vmatpush.msra.mxu0 %v828
    %v830 = vand.u32 %v114, 4294901760
    %831 = vmatmul.f32.gmra.mxu0 %v830
    %v832 = vpop.f32.mrf.mxu0
    %v833 = vadd.f32 %v796, %v832
    %834 = vdwg.mxu0
    %v835 = vmax.f32 %v492, 0.0
    %v836 = vmax.f32 %v833, 0.0
    %v837 = vld [vmem:[#allocation8] sm:$0xff]
    %v838 = vld [vmem:[#allocation8 + $0x8] sm:$0xff]
    %v839 = vld [vmem:[#allocation8 + $0x10] sm:$0xff]
    %v840 = vld [vmem:[#allocation8 + $0x18] sm:$0xff]
    %v841 = vld [vmem:[#allocation8 + $0x20] sm:$0xff]
    %v842 = vld [vmem:[#allocation8 + $0x28] sm:$0xff]
    %v843 = vld [vmem:[#allocation8 + $0x30] sm:$0xff]
    %v844 = vld [vmem:[#allocation8 + $0x38] sm:$0xff]
    %v845 = vld [vmem:[#allocation8 + $0x40] sm:$0xff]
    %v846 = vld [vmem:[#allocation8 + $0x48] sm:$0xff]
    %v847 = vld [vmem:[#allocation8 + $0x50] sm:$0xff]
    %v848 = vld [vmem:[#allocation8 + $0x58] sm:$0xff]
    %v849 = vld [vmem:[#allocation8 + $0x60] sm:$0xff]
    %v850 = vld [vmem:[#allocation8 + $0x68] sm:$0xff]
    %v851 = vld [vmem:[#allocation8 + $0x70] sm:$0xff]
    %v852 = vld [vmem:[#allocation8 + $0x78] sm:$0xff]
    %v853 = vld [vmem:[#allocation8 + $0x80] sm:$0xff]
    %v854 = vld [vmem:[#allocation8 + $0x88] sm:$0xff]
    %v855 = vld [vmem:[#allocation8 + $0x90] sm:$0xff]
    %v856 = vld [vmem:[#allocation8 + $0x98] sm:$0xff]
    %v857 = vld [vmem:[#allocation8 + $0xa0] sm:$0xff]
    %v858 = vld [vmem:[#allocation8 + $0xa8] sm:$0xff]
    %v859 = vld [vmem:[#allocation8 + $0xb0] sm:$0xff]
    %v860 = vld [vmem:[#allocation8 + $0xb8] sm:$0xff]
    %v861 = vld [vmem:[#allocation8 + $0xc0] sm:$0xff]
    %v862 = vld [vmem:[#allocation8 + $0xc8] sm:$0xff]
    %v863 = vld [vmem:[#allocation8 + $0xd0] sm:$0xff]
    %v864 = vld [vmem:[#allocation8 + $0xd8] sm:$0xff]
    %v865 = vld [vmem:[#allocation8 + $0xe0] sm:$0xff]
    %v866 = vld [vmem:[#allocation8 + $0xe8] sm:$0xff]
    %v867 = vld [vmem:[#allocation8 + $0xf0] sm:$0xff]
    %v868 = vld [vmem:[#allocation8 + $0xf8] sm:$0xff]
    %v869 = vld [vmem:[#allocation10] sm:$0x1]
    %v870 = vperm.slane %v869, 0
    %v871 = vand.u32 %v852, 4294901760
    %872 = vmatpush.msra.mxu0 %v871
    %v873 = vand.u32 %v851, 4294901760
    %874 = vmatpush.msra.mxu0 %v873
    %v875 = vand.u32 %v850, 4294901760
    %876 = vmatpush.msra.mxu0 %v875
    %v877 = vand.u32 %v849, 4294901760
    %878 = vmatpush.msra.mxu0 %v877
    %v879 = vand.u32 %v848, 4294901760
    %880 = vmatpush.msra.mxu0 %v879
    %v881 = vand.u32 %v847, 4294901760
    %882 = vmatpush.msra.mxu0 %v881
    %v883 = vand.u32 %v846, 4294901760
    %884 = vmatpush.msra.mxu0 %v883
    %v885 = vand.u32 %v845, 4294901760
    %886 = vmatpush.msra.mxu0 %v885
    %v887 = vand.u32 %v844, 4294901760
    %888 = vmatpush.msra.mxu0 %v887
    %v889 = vand.u32 %v843, 4294901760
    %890 = vmatpush.msra.mxu0 %v889
    %v891 = vand.u32 %v842, 4294901760
    %892 = vmatpush.msra.mxu0 %v891
    %v893 = vand.u32 %v841, 4294901760
    %894 = vmatpush.msra.mxu0 %v893
    %v895 = vand.u32 %v840, 4294901760
    %896 = vmatpush.msra.mxu0 %v895
    %v897 = vand.u32 %v839, 4294901760
    %898 = vmatpush.msra.mxu0 %v897
    %v899 = vand.u32 %v838, 4294901760
    %900 = vmatpush.msra.mxu0 %v899
    %v901 = vand.u32 %v837, 4294901760
    %902 = vmatpush.msra.mxu0 %v901
    %v903 = vand.u32 %v835, 4294901760
    %v904 = vsub.f32 %v835, %v903
    %v905 = vand.u32 %v904, 4294901760
    %v906 = vsub.f32 %v904, %v905
    %v907 = vand.u32 %v906, 4294901760
    %908 = vmatmul.f32.gmra.mxu0 %v907
    %v909 = vpop.f32.mrf.mxu0
    %v910 = vadd.f32 %v870, %v909
    %911 = vdwg.mxu0
    %v912 = vand.u32 %v852, 4294901760
    %v913 = vsub.f32 %v852, %v912
    %v914 = vand.u32 %v913, 4294901760
    %v915 = vsub.f32 %v913, %v914
    %v916 = vand.u32 %v915, 4294901760
    %917 = vmatpush.msra.mxu0 %v916
    %v918 = vand.u32 %v851, 4294901760
    %v919 = vsub.f32 %v851, %v918
    %v920 = vand.u32 %v919, 4294901760
    %v921 = vsub.f32 %v919, %v920
    %v922 = vand.u32 %v921, 4294901760
    %923 = vmatpush.msra.mxu0 %v922
    %v924 = vand.u32 %v850, 4294901760
    %v925 = vsub.f32 %v850, %v924
    %v926 = vand.u32 %v925, 4294901760
    %v927 = vsub.f32 %v925, %v926
    %v928 = vand.u32 %v927, 4294901760
    %929 = vmatpush.msra.mxu0 %v928
    %v930 = vand.u32 %v849, 4294901760
    %v931 = vsub.f32 %v849, %v930
    %v932 = vand.u32 %v931, 4294901760
    %v933 = vsub.f32 %v931, %v932
    %v934 = vand.u32 %v933, 4294901760
    %935 = vmatpush.msra.mxu0 %v934
    %v936 = vand.u32 %v848, 4294901760
    %v937 = vsub.f32 %v848, %v936
    %v938 = vand.u32 %v937, 4294901760
    %v939 = vsub.f32 %v937, %v938
    %v940 = vand.u32 %v939, 4294901760
    %941 = vmatpush.msra.mxu0 %v940
    %v942 = vand.u32 %v847, 4294901760
    %v943 = vsub.f32 %v847, %v942
    %v944 = vand.u32 %v943, 4294901760
    %v945 = vsub.f32 %v943, %v944
    %v946 = vand.u32 %v945, 4294901760
    %947 = vmatpush.msra.mxu0 %v946
    %v948 = vand.u32 %v846, 4294901760
    %v949 = vsub.f32 %v846, %v948
    %v950 = vand.u32 %v949, 4294901760
    %v951 = vsub.f32 %v949, %v950
    %v952 = vand.u32 %v951, 4294901760
    %953 = vmatpush.msra.mxu0 %v952
    %v954 = vand.u32 %v845, 4294901760
    %v955 = vsub.f32 %v845, %v954
    %v956 = vand.u32 %v955, 4294901760
    %v957 = vsub.f32 %v955, %v956
    %v958 = vand.u32 %v957, 4294901760
    %959 = vmatpush.msra.mxu0 %v958
    %v960 = vand.u32 %v844, 4294901760
    %v961 = vsub.f32 %v844, %v960
    %v962 = vand.u32 %v961, 4294901760
    %v963 = vsub.f32 %v961, %v962
    %v964 = vand.u32 %v963, 4294901760
    %965 = vmatpush.msra.mxu0 %v964
    %v966 = vand.u32 %v843, 4294901760
    %v967 = vsub.f32 %v843, %v966
    %v968 = vand.u32 %v967, 4294901760
    %v969 = vsub.f32 %v967, %v968
    %v970 = vand.u32 %v969, 4294901760
    %971 = vmatpush.msra.mxu0 %v970
    %v972 = vand.u32 %v842, 4294901760
    %v973 = vsub.f32 %v842, %v972
    %v974 = vand.u32 %v973, 4294901760
    %v975 = vsub.f32 %v973, %v974
    %v976 = vand.u32 %v975, 4294901760
    %977 = vmatpush.msra.mxu0 %v976
    %v978 = vand.u32 %v841, 4294901760
    %v979 = vsub.f32 %v841, %v978
    %v980 = vand.u32 %v979, 4294901760
    %v981 = vsub.f32 %v979, %v980
    %v982 = vand.u32 %v981, 4294901760
    %983 = vmatpush.msra.mxu0 %v982
    %v984 = vand.u32 %v840, 4294901760
    %v985 = vsub.f32 %v840, %v984
    %v986 = vand.u32 %v985, 4294901760
    %v987 = vsub.f32 %v985, %v986
    %v988 = vand.u32 %v987, 4294901760
    %989 = vmatpush.msra.mxu0 %v988
    %v990 = vand.u32 %v839, 4294901760
    %v991 = vsub.f32 %v839, %v990
    %v992 = vand.u32 %v991, 4294901760
    %v993 = vsub.f32 %v991, %v992
    %v994 = vand.u32 %v993, 4294901760
    %995 = vmatpush.msra.mxu0 %v994
    %v996 = vand.u32 %v838, 4294901760
    %v997 = vsub.f32 %v838, %v996
    %v998 = vand.u32 %v997, 4294901760
    %v999 = vsub.f32 %v997, %v998
    %v1000 = vand.u32 %v999, 4294901760
    %1001 = vmatpush.msra.mxu0 %v1000
    %v1002 = vand.u32 %v837, 4294901760
    %v1003 = vsub.f32 %v837, %v1002
    %v1004 = vand.u32 %v1003, 4294901760
    %v1005 = vsub.f32 %v1003, %v1004
    %v1006 = vand.u32 %v1005, 4294901760
    %1007 = vmatpush.msra.mxu0 %v1006
    %v1008 = vand.u32 %v835, 4294901760
    %1009 = vmatmul.f32.gmra.mxu0 %v1008
    %v1010 = vpop.f32.mrf.mxu0
    %v1011 = vadd.f32 %v910, %v1010
    %1012 = vdwg.mxu0
    %v1013 = vand.u32 %v852, 4294901760
    %v1014 = vsub.f32 %v852, %v1013
    %1015 = vmatpush.msra.mxu0 %v1014
    %v1016 = vand.u32 %v851, 4294901760
    %v1017 = vsub.f32 %v851, %v1016
    %1018 = vmatpush.msra.mxu0 %v1017
    %v1019 = vand.u32 %v850, 4294901760
    %v1020 = vsub.f32 %v850, %v1019
    %1021 = vmatpush.msra.mxu0 %v1020
    %v1022 = vand.u32 %v849, 4294901760
    %v1023 = vsub.f32 %v849, %v1022
    %1024 = vmatpush.msra.mxu0 %v1023
    %v1025 = vand.u32 %v848, 4294901760
    %v1026 = vsub.f32 %v848, %v1025
    %1027 = vmatpush.msra.mxu0 %v1026
    %v1028 = vand.u32 %v847, 4294901760
    %v1029 = vsub.f32 %v847, %v1028
    %1030 = vmatpush.msra.mxu0 %v1029
    %v1031 = vand.u32 %v846, 4294901760
    %v1032 = vsub.f32 %v846, %v1031
    %1033 = vmatpush.msra.mxu0 %v1032
    %v1034 = vand.u32 %v845, 4294901760
    %v1035 = vsub.f32 %v845, %v1034
    %1036 = vmatpush.msra.mxu0 %v1035
    %v1037 = vand.u32 %v844, 4294901760
    %v1038 = vsub.f32 %v844, %v1037
    %1039 = vmatpush.msra.mxu0 %v1038
    %v1040 = vand.u32 %v843, 4294901760
    %v1041 = vsub.f32 %v843, %v1040
    %1042 = vmatpush.msra.mxu0 %v1041
    %v1043 = vand.u32 %v842, 4294901760
    %v1044 = vsub.f32 %v842, %v1043
    %1045 = vmatpush.msra.mxu0 %v1044
    %v1046 = vand.u32 %v841, 4294901760
    %v1047 = vsub.f32 %v841, %v1046
    %1048 = vmatpush.msra.mxu0 %v1047
    %v1049 = vand.u32 %v840, 4294901760
    %v1050 = vsub.f32 %v840, %v1049
    %1051 = vmatpush.msra.mxu0 %v1050
    %v1052 = vand.u32 %v839, 4294901760
    %v1053 = vsub.f32 %v839, %v1052
    %1054 = vmatpush.msra.mxu0 %v1053
    %v1055 = vand.u32 %v838, 4294901760
    %v1056 = vsub.f32 %v838, %v1055
    %1057 = vmatpush.msra.mxu0 %v1056
    %v1058 = vand.u32 %v837, 4294901760
    %v1059 = vsub.f32 %v837, %v1058
    %1060 = vmatpush.msra.mxu0 %v1059
    %v1061 = vand.u32 %v835, 4294901760
    %v1062 = vsub.f32 %v835, %v1061
    %1063 = vmatmul.f32.gmra.mxu0 %v1062
    %v1064 = vpop.f32.mrf.mxu0
    %v1065 = vadd.f32 %v1011, %v1064
    %1066 = vdwg.mxu0
    %v1067 = vand.u32 %v852, 4294901760
    %1068 = vmatpush.msra.mxu0 %v1067
    %v1069 = vand.u32 %v851, 4294901760
    %1070 = vmatpush.msra.mxu0 %v1069
    %v1071 = vand.u32 %v850, 4294901760
    %1072 = vmatpush.msra.mxu0 %v1071
    %v1073 = vand.u32 %v849, 4294901760
    %1074 = vmatpush.msra.mxu0 %v1073
    %v1075 = vand.u32 %v848, 4294901760
    %1076 = vmatpush.msra.mxu0 %v1075
    %v1077 = vand.u32 %v847, 4294901760
    %1078 = vmatpush.msra.mxu0 %v1077
    %v1079 = vand.u32 %v846, 4294901760
    %1080 = vmatpush.msra.mxu0 %v1079
    %v1081 = vand.u32 %v845, 4294901760
    %1082 = vmatpush.msra.mxu0 %v1081
    %v1083 = vand.u32 %v844, 4294901760
    %1084 = vmatpush.msra.mxu0 %v1083
    %v1085 = vand.u32 %v843, 4294901760
    %1086 = vmatpush.msra.mxu0 %v1085
    %v1087 = vand.u32 %v842, 4294901760
    %1088 = vmatpush.msra.mxu0 %v1087
    %v1089 = vand.u32 %v841, 4294901760
    %1090 = vmatpush.msra.mxu0 %v1089
    %v1091 = vand.u32 %v840, 4294901760
    %1092 = vmatpush.msra.mxu0 %v1091
    %v1093 = vand.u32 %v839, 4294901760
    %1094 = vmatpush.msra.mxu0 %v1093
    %v1095 = vand.u32 %v838, 4294901760
    %1096 = vmatpush.msra.mxu0 %v1095
    %v1097 = vand.u32 %v837, 4294901760
    %1098 = vmatpush.msra.mxu0 %v1097
    %v1099 = vand.u32 %v835, 4294901760
    %v1100 = vsub.f32 %v835, %v1099
    %v1101 = vand.u32 %v1100, 4294901760
    %1102 = vmatmul.f32.gmra.mxu0 %v1101
    %v1103 = vpop.f32.mrf.mxu0
    %v1104 = vadd.f32 %v1065, %v1103
    %1105 = vdwg.mxu0
    %v1106 = vand.u32 %v852, 4294901760
    %v1107 = vsub.f32 %v852, %v1106
    %v1108 = vand.u32 %v1107, 4294901760
    %1109 = vmatpush.msra.mxu0 %v1108
    %v1110 = vand.u32 %v851, 4294901760
    %v1111 = vsub.f32 %v851, %v1110
    %v1112 = vand.u32 %v1111, 4294901760
    %1113 = vmatpush.msra.mxu0 %v1112
    %v1114 = vand.u32 %v850, 4294901760
    %v1115 = vsub.f32 %v850, %v1114
    %v1116 = vand.u32 %v1115, 4294901760
    %1117 = vmatpush.msra.mxu0 %v1116
    %v1118 = vand.u32 %v849, 4294901760
    %v1119 = vsub.f32 %v849, %v1118
    %v1120 = vand.u32 %v1119, 4294901760
    %1121 = vmatpush.msra.mxu0 %v1120
    %v1122 = vand.u32 %v848, 4294901760
    %v1123 = vsub.f32 %v848, %v1122
    %v1124 = vand.u32 %v1123, 4294901760
    %1125 = vmatpush.msra.mxu0 %v1124
    %v1126 = vand.u32 %v847, 4294901760
    %v1127 = vsub.f32 %v847, %v1126
    %v1128 = vand.u32 %v1127, 4294901760
    %1129 = vmatpush.msra.mxu0 %v1128
    %v1130 = vand.u32 %v846, 4294901760
    %v1131 = vsub.f32 %v846, %v1130
    %v1132 = vand.u32 %v1131, 4294901760
    %1133 = vmatpush.msra.mxu0 %v1132
    %v1134 = vand.u32 %v845, 4294901760
    %v1135 = vsub.f32 %v845, %v1134
    %v1136 = vand.u32 %v1135, 4294901760
    %1137 = vmatpush.msra.mxu0 %v1136
    %v1138 = vand.u32 %v844, 4294901760
    %v1139 = vsub.f32 %v844, %v1138
    %v1140 = vand.u32 %v1139, 4294901760
    %1141 = vmatpush.msra.mxu0 %v1140
    %v1142 = vand.u32 %v843, 4294901760
    %v1143 = vsub.f32 %v843, %v1142
    %v1144 = vand.u32 %v1143, 4294901760
    %1145 = vmatpush.msra.mxu0 %v1144
    %v1146 = vand.u32 %v842, 4294901760
    %v1147 = vsub.f32 %v842, %v1146
    %v1148 = vand.u32 %v1147, 4294901760
    %1149 = vmatpush.msra.mxu0 %v1148
    %v1150 = vand.u32 %v841, 4294901760
    %v1151 = vsub.f32 %v841, %v1150
    %v1152 = vand.u32 %v1151, 4294901760
    %1153 = vmatpush.msra.mxu0 %v1152
    %v1154 = vand.u32 %v840, 4294901760
    %v1155 = vsub.f32 %v840, %v1154
    %v1156 = vand.u32 %v1155, 4294901760
    %1157 = vmatpush.msra.mxu0 %v1156
    %v1158 = vand.u32 %v839, 4294901760
    %v1159 = vsub.f32 %v839, %v1158
    %v1160 = vand.u32 %v1159, 4294901760
    %1161 = vmatpush.msra.mxu0 %v1160
    %v1162 = vand.u32 %v838, 4294901760
    %v1163 = vsub.f32 %v838, %v1162
    %v1164 = vand.u32 %v1163, 4294901760
    %1165 = vmatpush.msra.mxu0 %v1164
    %v1166 = vand.u32 %v837, 4294901760
    %v1167 = vsub.f32 %v837, %v1166
    %v1168 = vand.u32 %v1167, 4294901760
    %1169 = vmatpush.msra.mxu0 %v1168
    %v1170 = vand.u32 %v835, 4294901760
    %1171 = vmatmul.f32.gmra.mxu0 %v1170
    %v1172 = vpop.f32.mrf.mxu0
    %v1173 = vadd.f32 %v1104, %v1172
    %1174 = vdwg.mxu0
    %v1175 = vand.u32 %v852, 4294901760
    %1176 = vmatpush.msra.mxu0 %v1175
    %v1177 = vand.u32 %v851, 4294901760
    %1178 = vmatpush.msra.mxu0 %v1177
    %v1179 = vand.u32 %v850, 4294901760
    %1180 = vmatpush.msra.mxu0 %v1179
    %v1181 = vand.u32 %v849, 4294901760
    %1182 = vmatpush.msra.mxu0 %v1181
    %v1183 = vand.u32 %v848, 4294901760
    %1184 = vmatpush.msra.mxu0 %v1183
    %v1185 = vand.u32 %v847, 4294901760
    %1186 = vmatpush.msra.mxu0 %v1185
    %v1187 = vand.u32 %v846, 4294901760
    %1188 = vmatpush.msra.mxu0 %v1187
    %v1189 = vand.u32 %v845, 4294901760
    %1190 = vmatpush.msra.mxu0 %v1189
    %v1191 = vand.u32 %v844, 4294901760
    %1192 = vmatpush.msra.mxu0 %v1191
    %v1193 = vand.u32 %v843, 4294901760
    %1194 = vmatpush.msra.mxu0 %v1193
    %v1195 = vand.u32 %v842, 4294901760
    %1196 = vmatpush.msra.mxu0 %v1195
    %v1197 = vand.u32 %v841, 4294901760
    %1198 = vmatpush.msra.mxu0 %v1197
    %v1199 = vand.u32 %v840, 4294901760
    %1200 = vmatpush.msra.mxu0 %v1199
    %v1201 = vand.u32 %v839, 4294901760
    %1202 = vmatpush.msra.mxu0 %v1201
    %v1203 = vand.u32 %v838, 4294901760
    %1204 = vmatpush.msra.mxu0 %v1203
    %v1205 = vand.u32 %v837, 4294901760
    %1206 = vmatpush.msra.mxu0 %v1205
    %v1207 = vand.u32 %v835, 4294901760
    %1208 = vmatmul.f32.gmra.mxu0 %v1207
    %v1209 = vpop.f32.mrf.mxu0
    %v1210 = vadd.f32 %v1173, %v1209
    %1211 = vdwg.mxu0
    %v1212 = vand.u32 %v868, 4294901760
    %1213 = vmatpush.msra.mxu0 %v1212
    %v1214 = vand.u32 %v867, 4294901760
    %1215 = vmatpush.msra.mxu0 %v1214
    %v1216 = vand.u32 %v866, 4294901760
    %1217 = vmatpush.msra.mxu0 %v1216
    %v1218 = vand.u32 %v865, 4294901760
    %1219 = vmatpush.msra.mxu0 %v1218
    %v1220 = vand.u32 %v864, 4294901760
    %1221 = vmatpush.msra.mxu0 %v1220
    %v1222 = vand.u32 %v863, 4294901760
    %1223 = vmatpush.msra.mxu0 %v1222
    %v1224 = vand.u32 %v862, 4294901760
    %1225 = vmatpush.msra.mxu0 %v1224
    %v1226 = vand.u32 %v861, 4294901760
    %1227 = vmatpush.msra.mxu0 %v1226
    %v1228 = vand.u32 %v860, 4294901760
    %1229 = vmatpush.msra.mxu0 %v1228
    %v1230 = vand.u32 %v859, 4294901760
    %1231 = vmatpush.msra.mxu0 %v1230
    %v1232 = vand.u32 %v858, 4294901760
    %1233 = vmatpush.msra.mxu0 %v1232
    %v1234 = vand.u32 %v857, 4294901760
    %1235 = vmatpush.msra.mxu0 %v1234
    %v1236 = vand.u32 %v856, 4294901760
    %1237 = vmatpush.msra.mxu0 %v1236
    %v1238 = vand.u32 %v855, 4294901760
    %1239 = vmatpush.msra.mxu0 %v1238
    %v1240 = vand.u32 %v854, 4294901760
    %1241 = vmatpush.msra.mxu0 %v1240
    %v1242 = vand.u32 %v853, 4294901760
    %1243 = vmatpush.msra.mxu0 %v1242
    %v1244 = vand.u32 %v836, 4294901760
    %v1245 = vsub.f32 %v836, %v1244
    %v1246 = vand.u32 %v1245, 4294901760
    %v1247 = vsub.f32 %v1245, %v1246
    %v1248 = vand.u32 %v1247, 4294901760
    %1249 = vmatmul.f32.gmra.mxu0 %v1248
    %v1250 = vpop.f32.mrf.mxu0
    %v1251 = vadd.f32 %v1210, %v1250
    %1252 = vdwg.mxu0
    %v1253 = vand.u32 %v868, 4294901760
    %v1254 = vsub.f32 %v868, %v1253
    %v1255 = vand.u32 %v1254, 4294901760
    %v1256 = vsub.f32 %v1254, %v1255
    %v1257 = vand.u32 %v1256, 4294901760
    %1258 = vmatpush.msra.mxu0 %v1257
    %v1259 = vand.u32 %v867, 4294901760
    %v1260 = vsub.f32 %v867, %v1259
    %v1261 = vand.u32 %v1260, 4294901760
    %v1262 = vsub.f32 %v1260, %v1261
    %v1263 = vand.u32 %v1262, 4294901760
    %1264 = vmatpush.msra.mxu0 %v1263
    %v1265 = vand.u32 %v866, 4294901760
    %v1266 = vsub.f32 %v866, %v1265
    %v1267 = vand.u32 %v1266, 4294901760
    %v1268 = vsub.f32 %v1266, %v1267
    %v1269 = vand.u32 %v1268, 4294901760
    %1270 = vmatpush.msra.mxu0 %v1269
    %v1271 = vand.u32 %v865, 4294901760
    %v1272 = vsub.f32 %v865, %v1271
    %v1273 = vand.u32 %v1272, 4294901760
    %v1274 = vsub.f32 %v1272, %v1273
    %v1275 = vand.u32 %v1274, 4294901760
    %1276 = vmatpush.msra.mxu0 %v1275
    %v1277 = vand.u32 %v864, 4294901760
    %v1278 = vsub.f32 %v864, %v1277
    %v1279 = vand.u32 %v1278, 4294901760
    %v1280 = vsub.f32 %v1278, %v1279
    %v1281 = vand.u32 %v1280, 4294901760
    %1282 = vmatpush.msra.mxu0 %v1281
    %v1283 = vand.u32 %v863, 4294901760
    %v1284 = vsub.f32 %v863, %v1283
    %v1285 = vand.u32 %v1284, 4294901760
    %v1286 = vsub.f32 %v1284, %v1285
    %v1287 = vand.u32 %v1286, 4294901760
    %1288 = vmatpush.msra.mxu0 %v1287
    %v1289 = vand.u32 %v862, 4294901760
    %v1290 = vsub.f32 %v862, %v1289
    %v1291 = vand.u32 %v1290, 4294901760
    %v1292 = vsub.f32 %v1290, %v1291
    %v1293 = vand.u32 %v1292, 4294901760
    %1294 = vmatpush.msra.mxu0 %v1293
    %v1295 = vand.u32 %v861, 4294901760
    %v1296 = vsub.f32 %v861, %v1295
    %v1297 = vand.u32 %v1296, 4294901760
    %v1298 = vsub.f32 %v1296, %v1297
    %v1299 = vand.u32 %v1298, 4294901760
    %1300 = vmatpush.msra.mxu0 %v1299
    %v1301 = vand.u32 %v860, 4294901760
    %v1302 = vsub.f32 %v860, %v1301
    %v1303 = vand.u32 %v1302, 4294901760
    %v1304 = vsub.f32 %v1302, %v1303
    %v1305 = vand.u32 %v1304, 4294901760
    %1306 = vmatpush.msra.mxu0 %v1305
    %v1307 = vand.u32 %v859, 4294901760
    %v1308 = vsub.f32 %v859, %v1307
    %v1309 = vand.u32 %v1308, 4294901760
    %v1310 = vsub.f32 %v1308, %v1309
    %v1311 = vand.u32 %v1310, 4294901760
    %1312 = vmatpush.msra.mxu0 %v1311
    %v1313 = vand.u32 %v858, 4294901760
    %v1314 = vsub.f32 %v858, %v1313
    %v1315 = vand.u32 %v1314, 4294901760
    %v1316 = vsub.f32 %v1314, %v1315
    %v1317 = vand.u32 %v1316, 4294901760
    %1318 = vmatpush.msra.mxu0 %v1317
    %v1319 = vand.u32 %v857, 4294901760
    %v1320 = vsub.f32 %v857, %v1319
    %v1321 = vand.u32 %v1320, 4294901760
    %v1322 = vsub.f32 %v1320, %v1321
    %v1323 = vand.u32 %v1322, 4294901760
    %1324 = vmatpush.msra.mxu0 %v1323
    %v1325 = vand.u32 %v856, 4294901760
    %v1326 = vsub.f32 %v856, %v1325
    %v1327 = vand.u32 %v1326, 4294901760
    %v1328 = vsub.f32 %v1326, %v1327
    %v1329 = vand.u32 %v1328, 4294901760
    %1330 = vmatpush.msra.mxu0 %v1329
    %v1331 = vand.u32 %v855, 4294901760
    %v1332 = vsub.f32 %v855, %v1331
    %v1333 = vand.u32 %v1332, 4294901760
    %v1334 = vsub.f32 %v1332, %v1333
    %v1335 = vand.u32 %v1334, 4294901760
    %1336 = vmatpush.msra.mxu0 %v1335
    %v1337 = vand.u32 %v854, 4294901760
    %v1338 = vsub.f32 %v854, %v1337
    %v1339 = vand.u32 %v1338, 4294901760
    %v1340 = vsub.f32 %v1338, %v1339
    %v1341 = vand.u32 %v1340, 4294901760
    %1342 = vmatpush.msra.mxu0 %v1341
    %v1343 = vand.u32 %v853, 4294901760
    %v1344 = vsub.f32 %v853, %v1343
    %v1345 = vand.u32 %v1344, 4294901760
    %v1346 = vsub.f32 %v1344, %v1345
    %v1347 = vand.u32 %v1346, 4294901760
    %1348 = vmatpush.msra.mxu0 %v1347
    %v1349 = vand.u32 %v836, 4294901760
    %1350 = vmatmul.f32.gmra.mxu0 %v1349
    %v1351 = vpop.f32.mrf.mxu0
    %v1352 = vadd.f32 %v1251, %v1351
    %1353 = vdwg.mxu0
    %v1354 = vand.u32 %v868, 4294901760
    %v1355 = vsub.f32 %v868, %v1354
    %1356 = vmatpush.msra.mxu0 %v1355
    %v1357 = vand.u32 %v867, 4294901760
    %v1358 = vsub.f32 %v867, %v1357
    %1359 = vmatpush.msra.mxu0 %v1358
    %v1360 = vand.u32 %v866, 4294901760
    %v1361 = vsub.f32 %v866, %v1360
    %1362 = vmatpush.msra.mxu0 %v1361
    %v1363 = vand.u32 %v865, 4294901760
    %v1364 = vsub.f32 %v865, %v1363
    %1365 = vmatpush.msra.mxu0 %v1364
    %v1366 = vand.u32 %v864, 4294901760
    %v1367 = vsub.f32 %v864, %v1366
    %1368 = vmatpush.msra.mxu0 %v1367
    %v1369 = vand.u32 %v863, 4294901760
    %v1370 = vsub.f32 %v863, %v1369
    %1371 = vmatpush.msra.mxu0 %v1370
    %v1372 = vand.u32 %v862, 4294901760
    %v1373 = vsub.f32 %v862, %v1372
    %1374 = vmatpush.msra.mxu0 %v1373
    %v1375 = vand.u32 %v861, 4294901760
    %v1376 = vsub.f32 %v861, %v1375
    %1377 = vmatpush.msra.mxu0 %v1376
    %v1378 = vand.u32 %v860, 4294901760
    %v1379 = vsub.f32 %v860, %v1378
    %1380 = vmatpush.msra.mxu0 %v1379
    %v1381 = vand.u32 %v859, 4294901760
    %v1382 = vsub.f32 %v859, %v1381
    %1383 = vmatpush.msra.mxu0 %v1382
    %v1384 = vand.u32 %v858, 4294901760
    %v1385 = vsub.f32 %v858, %v1384
    %1386 = vmatpush.msra.mxu0 %v1385
    %v1387 = vand.u32 %v857, 4294901760
    %v1388 = vsub.f32 %v857, %v1387
    %1389 = vmatpush.msra.mxu0 %v1388
    %v1390 = vand.u32 %v856, 4294901760
    %v1391 = vsub.f32 %v856, %v1390
    %1392 = vmatpush.msra.mxu0 %v1391
    %v1393 = vand.u32 %v855, 4294901760
    %v1394 = vsub.f32 %v855, %v1393
    %1395 = vmatpush.msra.mxu0 %v1394
    %v1396 = vand.u32 %v854, 4294901760
    %v1397 = vsub.f32 %v854, %v1396
    %1398 = vmatpush.msra.mxu0 %v1397
    %v1399 = vand.u32 %v853, 4294901760
    %v1400 = vsub.f32 %v853, %v1399
    %1401 = vmatpush.msra.mxu0 %v1400
    %v1402 = vand.u32 %v836, 4294901760
    %v1403 = vsub.f32 %v836, %v1402
    %1404 = vmatmul.f32.gmra.mxu0 %v1403
    %v1405 = vpop.f32.mrf.mxu0
    %v1406 = vadd.f32 %v1352, %v1405
    %1407 = vdwg.mxu0
    %v1408 = vand.u32 %v868, 4294901760
    %1409 = vmatpush.msra.mxu0 %v1408
    %v1410 = vand.u32 %v867, 4294901760
    %1411 = vmatpush.msra.mxu0 %v1410
    %v1412 = vand.u32 %v866, 4294901760
    %1413 = vmatpush.msra.mxu0 %v1412
    %v1414 = vand.u32 %v865, 4294901760
    %1415 = vmatpush.msra.mxu0 %v1414
    %v1416 = vand.u32 %v864, 4294901760
    %1417 = vmatpush.msra.mxu0 %v1416
    %v1418 = vand.u32 %v863, 4294901760
    %1419 = vmatpush.msra.mxu0 %v1418
    %v1420 = vand.u32 %v862, 4294901760
    %1421 = vmatpush.msra.mxu0 %v1420
    %v1422 = vand.u32 %v861, 4294901760
    %1423 = vmatpush.msra.mxu0 %v1422
    %v1424 = vand.u32 %v860, 4294901760
    %1425 = vmatpush.msra.mxu0 %v1424
    %v1426 = vand.u32 %v859, 4294901760
    %1427 = vmatpush.msra.mxu0 %v1426
    %v1428 = vand.u32 %v858, 4294901760
    %1429 = vmatpush.msra.mxu0 %v1428
    %v1430 = vand.u32 %v857, 4294901760
    %1431 = vmatpush.msra.mxu0 %v1430
    %v1432 = vand.u32 %v856, 4294901760
    %1433 = vmatpush.msra.mxu0 %v1432
    %v1434 = vand.u32 %v855, 4294901760
    %1435 = vmatpush.msra.mxu0 %v1434
    %v1436 = vand.u32 %v854, 4294901760
    %1437 = vmatpush.msra.mxu0 %v1436
    %v1438 = vand.u32 %v853, 4294901760
    %1439 = vmatpush.msra.mxu0 %v1438
    %v1440 = vand.u32 %v836, 4294901760
    %v1441 = vsub.f32 %v836, %v1440
    %v1442 = vand.u32 %v1441, 4294901760
    %1443 = vmatmul.f32.gmra.mxu0 %v1442
    %v1444 = vpop.f32.mrf.mxu0
    %v1445 = vadd.f32 %v1406, %v1444
    %1446 = vdwg.mxu0
    %v1447 = vand.u32 %v868, 4294901760
    %v1448 = vsub.f32 %v868, %v1447
    %v1449 = vand.u32 %v1448, 4294901760
    %1450 = vmatpush.msra.mxu0 %v1449
    %v1451 = vand.u32 %v867, 4294901760
    %v1452 = vsub.f32 %v867, %v1451
    %v1453 = vand.u32 %v1452, 4294901760
    %1454 = vmatpush.msra.mxu0 %v1453
    %v1455 = vand.u32 %v866, 4294901760
    %v1456 = vsub.f32 %v866, %v1455
    %v1457 = vand.u32 %v1456, 4294901760
    %1458 = vmatpush.msra.mxu0 %v1457
    %v1459 = vand.u32 %v865, 4294901760
    %v1460 = vsub.f32 %v865, %v1459
    %v1461 = vand.u32 %v1460, 4294901760
    %1462 = vmatpush.msra.mxu0 %v1461
    %v1463 = vand.u32 %v864, 4294901760
    %v1464 = vsub.f32 %v864, %v1463
    %v1465 = vand.u32 %v1464, 4294901760
    %1466 = vmatpush.msra.mxu0 %v1465
    %v1467 = vand.u32 %v863, 4294901760
    %v1468 = vsub.f32 %v863, %v1467
    %v1469 = vand.u32 %v1468, 4294901760
    %1470 = vmatpush.msra.mxu0 %v1469
    %v1471 = vand.u32 %v862, 4294901760
    %v1472 = vsub.f32 %v862, %v1471
    %v1473 = vand.u32 %v1472, 4294901760
    %1474 = vmatpush.msra.mxu0 %v1473
    %v1475 = vand.u32 %v861, 4294901760
    %v1476 = vsub.f32 %v861, %v1475
    %v1477 = vand.u32 %v1476, 4294901760
    %1478 = vmatpush.msra.mxu0 %v1477
    %v1479 = vand.u32 %v860, 4294901760
    %v1480 = vsub.f32 %v860, %v1479
    %v1481 = vand.u32 %v1480, 4294901760
    %1482 = vmatpush.msra.mxu0 %v1481
    %v1483 = vand.u32 %v859, 4294901760
    %v1484 = vsub.f32 %v859, %v1483
    %v1485 = vand.u32 %v1484, 4294901760
    %1486 = vmatpush.msra.mxu0 %v1485
    %v1487 = vand.u32 %v858, 4294901760
    %v1488 = vsub.f32 %v858, %v1487
    %v1489 = vand.u32 %v1488, 4294901760
    %1490 = vmatpush.msra.mxu0 %v1489
    %v1491 = vand.u32 %v857, 4294901760
    %v1492 = vsub.f32 %v857, %v1491
    %v1493 = vand.u32 %v1492, 4294901760
    %1494 = vmatpush.msra.mxu0 %v1493
    %v1495 = vand.u32 %v856, 4294901760
    %v1496 = vsub.f32 %v856, %v1495
    %v1497 = vand.u32 %v1496, 4294901760
    %1498 = vmatpush.msra.mxu0 %v1497
    %v1499 = vand.u32 %v855, 4294901760
    %v1500 = vsub.f32 %v855, %v1499
    %v1501 = vand.u32 %v1500, 4294901760
    %1502 = vmatpush.msra.mxu0 %v1501
    %v1503 = vand.u32 %v854, 4294901760
    %v1504 = vsub.f32 %v854, %v1503
    %v1505 = vand.u32 %v1504, 4294901760
    %1506 = vmatpush.msra.mxu0 %v1505
    %v1507 = vand.u32 %v853, 4294901760
    %v1508 = vsub.f32 %v853, %v1507
    %v1509 = vand.u32 %v1508, 4294901760
    %1510 = vmatpush.msra.mxu0 %v1509
    %v1511 = vand.u32 %v836, 4294901760
    %1512 = vmatmul.f32.gmra.mxu0 %v1511
    %v1513 = vpop.f32.mrf.mxu0
    %v1514 = vadd.f32 %v1445, %v1513
    %1515 = vdwg.mxu0
    %v1516 = vand.u32 %v868, 4294901760
    %1517 = vmatpush.msra.mxu0 %v1516
    %v1518 = vand.u32 %v867, 4294901760
    %1519 = vmatpush.msra.mxu0 %v1518
    %v1520 = vand.u32 %v866, 4294901760
    %1521 = vmatpush.msra.mxu0 %v1520
    %v1522 = vand.u32 %v865, 4294901760
    %1523 = vmatpush.msra.mxu0 %v1522
    %v1524 = vand.u32 %v864, 4294901760
    %1525 = vmatpush.msra.mxu0 %v1524
    %v1526 = vand.u32 %v863, 4294901760
    %1527 = vmatpush.msra.mxu0 %v1526
    %v1528 = vand.u32 %v862, 4294901760
    %1529 = vmatpush.msra.mxu0 %v1528
    %v1530 = vand.u32 %v861, 4294901760
    %1531 = vmatpush.msra.mxu0 %v1530
    %v1532 = vand.u32 %v860, 4294901760
    %1533 = vmatpush.msra.mxu0 %v1532
    %v1534 = vand.u32 %v859, 4294901760
    %1535 = vmatpush.msra.mxu0 %v1534
    %v1536 = vand.u32 %v858, 4294901760
    %1537 = vmatpush.msra.mxu0 %v1536
    %v1538 = vand.u32 %v857, 4294901760
    %1539 = vmatpush.msra.mxu0 %v1538
    %v1540 = vand.u32 %v856, 4294901760
    %1541 = vmatpush.msra.mxu0 %v1540
    %v1542 = vand.u32 %v855, 4294901760
    %1543 = vmatpush.msra.mxu0 %v1542
    %v1544 = vand.u32 %v854, 4294901760
    %1545 = vmatpush.msra.mxu0 %v1544
    %v1546 = vand.u32 %v853, 4294901760
    %1547 = vmatpush.msra.mxu0 %v1546
    %v1548 = vand.u32 %v836, 4294901760
    %1549 = vmatmul.f32.gmra.mxu0 %v1548
    %v1550 = vpop.f32.mrf.mxu0
    %v1551 = vadd.f32 %v1514, %v1550
    %1552 = vdwg.mxu0
    %v1553 = vadd.f32 %v1551, %v114
    %v1554 = vld [vmem:[#allocation11] sm:$0xff]
    %v1555 = vld [vmem:[#allocation11 + $0x8] sm:$0xff]
    %v1556 = vld [vmem:[#allocation11 + $0x10] sm:$0xff]
    %v1557 = vld [vmem:[#allocation11 + $0x18] sm:$0xff]
    %v1558 = vld [vmem:[#allocation11 + $0x20] sm:$0xff]
    %v1559 = vld [vmem:[#allocation11 + $0x28] sm:$0xff]
    %v1560 = vld [vmem:[#allocation11 + $0x30] sm:$0xff]
    %v1561 = vld [vmem:[#allocation11 + $0x38] sm:$0xff]
    %v1562 = vld [vmem:[#allocation11 + $0x40] sm:$0xff]
    %v1563 = vld [vmem:[#allocation11 + $0x48] sm:$0xff]
    %v1564 = vld [vmem:[#allocation11 + $0x50] sm:$0xff]
    %v1565 = vld [vmem:[#allocation11 + $0x58] sm:$0xff]
    %v1566 = vld [vmem:[#allocation11 + $0x60] sm:$0xff]
    %v1567 = vld [vmem:[#allocation11 + $0x68] sm:$0xff]
    %v1568 = vld [vmem:[#allocation11 + $0x70] sm:$0xff]
    %v1569 = vld [vmem:[#allocation11 + $0x78] sm:$0xff]
    %v1570 = vand.u32 %v1569, 4294901760
    %1571 = vmatpush.msra.mxu0 %v1570
    %v1572 = vand.u32 %v1568, 4294901760
    %1573 = vmatpush.msra.mxu0 %v1572
    %v1574 = vand.u32 %v1567, 4294901760
    %1575 = vmatpush.msra.mxu0 %v1574
    %v1576 = vand.u32 %v1566, 4294901760
    %1577 = vmatpush.msra.mxu0 %v1576
    %v1578 = vand.u32 %v1565, 4294901760
    %1579 = vmatpush.msra.mxu0 %v1578
    %v1580 = vand.u32 %v1564, 4294901760
    %1581 = vmatpush.msra.mxu0 %v1580
    %v1582 = vand.u32 %v1563, 4294901760
    %1583 = vmatpush.msra.mxu0 %v1582
    %v1584 = vand.u32 %v1562, 4294901760
    %1585 = vmatpush.msra.mxu0 %v1584
    %v1586 = vand.u32 %v1561, 4294901760
    %1587 = vmatpush.msra.mxu0 %v1586
    %v1588 = vand.u32 %v1560, 4294901760
    %1589 = vmatpush.msra.mxu0 %v1588
    %v1590 = vand.u32 %v1559, 4294901760
    %1591 = vmatpush.msra.mxu0 %v1590
    %v1592 = vand.u32 %v1558, 4294901760
    %1593 = vmatpush.msra.mxu0 %v1592
    %v1594 = vand.u32 %v1557, 4294901760
    %1595 = vmatpush.msra.mxu0 %v1594
    %v1596 = vand.u32 %v1556, 4294901760
    %1597 = vmatpush.msra.mxu0 %v1596
    %v1598 = vand.u32 %v1555, 4294901760
    %1599 = vmatpush.msra.mxu0 %v1598
    %v1600 = vand.u32 %v1554, 4294901760
    %1601 = vmatpush.msra.mxu0 %v1600
    %v1602 = vand.u32 %v1553, 4294901760
    %v1603 = vsub.f32 %v1553, %v1602
    %v1604 = vand.u32 %v1603, 4294901760
    %v1605 = vsub.f32 %v1603, %v1604
    %v1606 = vand.u32 %v1605, 4294901760
    %1607 = vmatmul.f32.gmra.mxu0 %v1606
    %v1608 = vpop.f32.mrf.mxu0
    %v1609 = vadd.f32 0.0, %v1608
    %1610 = vdwg.mxu0
    %v1611 = vand.u32 %v1569, 4294901760
    %v1612 = vsub.f32 %v1569, %v1611
    %v1613 = vand.u32 %v1612, 4294901760
    %v1614 = vsub.f32 %v1612, %v1613
    %v1615 = vand.u32 %v1614, 4294901760
    %1616 = vmatpush.msra.mxu0 %v1615
    %v1617 = vand.u32 %v1568, 4294901760
    %v1618 = vsub.f32 %v1568, %v1617
    %v1619 = vand.u32 %v1618, 4294901760
    %v1620 = vsub.f32 %v1618, %v1619
    %v1621 = vand.u32 %v1620, 4294901760
    %1622 = vmatpush.msra.mxu0 %v1621
    %v1623 = vand.u32 %v1567, 4294901760
    %v1624 = vsub.f32 %v1567, %v1623
    %v1625 = vand.u32 %v1624, 4294901760
    %v1626 = vsub.f32 %v1624, %v1625
    %v1627 = vand.u32 %v1626, 4294901760
    %1628 = vmatpush.msra.mxu0 %v1627
    %v1629 = vand.u32 %v1566, 4294901760
    %v1630 = vsub.f32 %v1566, %v1629
    %v1631 = vand.u32 %v1630, 4294901760
    %v1632 = vsub.f32 %v1630, %v1631
    %v1633 = vand.u32 %v1632, 4294901760
    %1634 = vmatpush.msra.mxu0 %v1633
    %v1635 = vand.u32 %v1565, 4294901760
    %v1636 = vsub.f32 %v1565, %v1635
    %v1637 = vand.u32 %v1636, 4294901760
    %v1638 = vsub.f32 %v1636, %v1637
    %v1639 = vand.u32 %v1638, 4294901760
    %1640 = vmatpush.msra.mxu0 %v1639
    %v1641 = vand.u32 %v1564, 4294901760
    %v1642 = vsub.f32 %v1564, %v1641
    %v1643 = vand.u32 %v1642, 4294901760
    %v1644 = vsub.f32 %v1642, %v1643
    %v1645 = vand.u32 %v1644, 4294901760
    %1646 = vmatpush.msra.mxu0 %v1645
    %v1647 = vand.u32 %v1563, 4294901760
    %v1648 = vsub.f32 %v1563, %v1647
    %v1649 = vand.u32 %v1648, 4294901760
    %v1650 = vsub.f32 %v1648, %v1649
    %v1651 = vand.u32 %v1650, 4294901760
    %1652 = vmatpush.msra.mxu0 %v1651
    %v1653 = vand.u32 %v1562, 4294901760
    %v1654 = vsub.f32 %v1562, %v1653
    %v1655 = vand.u32 %v1654, 4294901760
    %v1656 = vsub.f32 %v1654, %v1655
    %v1657 = vand.u32 %v1656, 4294901760
    %1658 = vmatpush.msra.mxu0 %v1657
    %v1659 = vand.u32 %v1561, 4294901760
    %v1660 = vsub.f32 %v1561, %v1659
    %v1661 = vand.u32 %v1660, 4294901760
    %v1662 = vsub.f32 %v1660, %v1661
    %v1663 = vand.u32 %v1662, 4294901760
    %1664 = vmatpush.msra.mxu0 %v1663
    %v1665 = vand.u32 %v1560, 4294901760
    %v1666 = vsub.f32 %v1560, %v1665
    %v1667 = vand.u32 %v1666, 4294901760
    %v1668 = vsub.f32 %v1666, %v1667
    %v1669 = vand.u32 %v1668, 4294901760
    %1670 = vmatpush.msra.mxu0 %v1669
    %v1671 = vand.u32 %v1559, 4294901760
    %v1672 = vsub.f32 %v1559, %v1671
    %v1673 = vand.u32 %v1672, 4294901760
    %v1674 = vsub.f32 %v1672, %v1673
    %v1675 = vand.u32 %v1674, 4294901760
    %1676 = vmatpush.msra.mxu0 %v1675
    %v1677 = vand.u32 %v1558, 4294901760
    %v1678 = vsub.f32 %v1558, %v1677
    %v1679 = vand.u32 %v1678, 4294901760
    %v1680 = vsub.f32 %v1678, %v1679
    %v1681 = vand.u32 %v1680, 4294901760
    %1682 = vmatpush.msra.mxu0 %v1681
    %v1683 = vand.u32 %v1557, 4294901760
    %v1684 = vsub.f32 %v1557, %v1683
    %v1685 = vand.u32 %v1684, 4294901760
    %v1686 = vsub.f32 %v1684, %v1685
    %v1687 = vand.u32 %v1686, 4294901760
    %1688 = vmatpush.msra.mxu0 %v1687
    %v1689 = vand.u32 %v1556, 4294901760
    %v1690 = vsub.f32 %v1556, %v1689
    %v1691 = vand.u32 %v1690, 4294901760
    %v1692 = vsub.f32 %v1690, %v1691
    %v1693 = vand.u32 %v1692, 4294901760
    %1694 = vmatpush.msra.mxu0 %v1693
    %v1695 = vand.u32 %v1555, 4294901760
    %v1696 = vsub.f32 %v1555, %v1695
    %v1697 = vand.u32 %v1696, 4294901760
    %v1698 = vsub.f32 %v1696, %v1697
    %v1699 = vand.u32 %v1698, 4294901760
    %1700 = vmatpush.msra.mxu0 %v1699
    %v1701 = vand.u32 %v1554, 4294901760
    %v1702 = vsub.f32 %v1554, %v1701
    %v1703 = vand.u32 %v1702, 4294901760
    %v1704 = vsub.f32 %v1702, %v1703
    %v1705 = vand.u32 %v1704, 4294901760
    %1706 = vmatpush.msra.mxu0 %v1705
    %v1707 = vand.u32 %v1553, 4294901760
    %1708 = vmatmul.f32.gmra.mxu0 %v1707
    %v1709 = vpop.f32.mrf.mxu0
    %v1710 = vadd.f32 %v1609, %v1709
    %1711 = vdwg.mxu0
    %v1712 = vand.u32 %v1569, 4294901760
    %v1713 = vsub.f32 %v1569, %v1712
    %1714 = vmatpush.msra.mxu0 %v1713
    %v1715 = vand.u32 %v1568, 4294901760
    %v1716 = vsub.f32 %v1568, %v1715
    %1717 = vmatpush.msra.mxu0 %v1716
    %v1718 = vand.u32 %v1567, 4294901760
    %v1719 = vsub.f32 %v1567, %v1718
    %1720 = vmatpush.msra.mxu0 %v1719
    %v1721 = vand.u32 %v1566, 4294901760
    %v1722 = vsub.f32 %v1566, %v1721
    %1723 = vmatpush.msra.mxu0 %v1722
    %v1724 = vand.u32 %v1565, 4294901760
    %v1725 = vsub.f32 %v1565, %v1724
    %1726 = vmatpush.msra.mxu0 %v1725
    %v1727 = vand.u32 %v1564, 4294901760
    %v1728 = vsub.f32 %v1564, %v1727
    %1729 = vmatpush.msra.mxu0 %v1728
    %v1730 = vand.u32 %v1563, 4294901760
    %v1731 = vsub.f32 %v1563, %v1730
    %1732 = vmatpush.msra.mxu0 %v1731
    %v1733 = vand.u32 %v1562, 4294901760
    %v1734 = vsub.f32 %v1562, %v1733
    %1735 = vmatpush.msra.mxu0 %v1734
    %v1736 = vand.u32 %v1561, 4294901760
    %v1737 = vsub.f32 %v1561, %v1736
    %1738 = vmatpush.msra.mxu0 %v1737
    %v1739 = vand.u32 %v1560, 4294901760
    %v1740 = vsub.f32 %v1560, %v1739
    %1741 = vmatpush.msra.mxu0 %v1740
    %v1742 = vand.u32 %v1559, 4294901760
    %v1743 = vsub.f32 %v1559, %v1742
    %1744 = vmatpush.msra.mxu0 %v1743
    %v1745 = vand.u32 %v1558, 4294901760
    %v1746 = vsub.f32 %v1558, %v1745
    %1747 = vmatpush.msra.mxu0 %v1746
    %v1748 = vand.u32 %v1557, 4294901760
    %v1749 = vsub.f32 %v1557, %v1748
    %1750 = vmatpush.msra.mxu0 %v1749
    %v1751 = vand.u32 %v1556, 4294901760
    %v1752 = vsub.f32 %v1556, %v1751
    %1753 = vmatpush.msra.mxu0 %v1752
    %v1754 = vand.u32 %v1555, 4294901760
    %v1755 = vsub.f32 %v1555, %v1754
    %1756 = vmatpush.msra.mxu0 %v1755
    %v1757 = vand.u32 %v1554, 4294901760
    %v1758 = vsub.f32 %v1554, %v1757
    %1759 = vmatpush.msra.mxu0 %v1758
    %v1760 = vand.u32 %v1553, 4294901760
    %v1761 = vsub.f32 %v1553, %v1760
    %1762 = vmatmul.f32.gmra.mxu0 %v1761
    %v1763 = vpop.f32.mrf.mxu0
    %v1764 = vadd.f32 %v1710, %v1763
    %1765 = vdwg.mxu0
    %v1766 = vand.u32 %v1569, 4294901760
    %1767 = vmatpush.msra.mxu0 %v1766
    %v1768 = vand.u32 %v1568, 4294901760
    %1769 = vmatpush.msra.mxu0 %v1768
    %v1770 = vand.u32 %v1567, 4294901760
    %1771 = vmatpush.msra.mxu0 %v1770
    %v1772 = vand.u32 %v1566, 4294901760
    %1773 = vmatpush.msra.mxu0 %v1772
    %v1774 = vand.u32 %v1565, 4294901760
    %1775 = vmatpush.msra.mxu0 %v1774
    %v1776 = vand.u32 %v1564, 4294901760
    %1777 = vmatpush.msra.mxu0 %v1776
    %v1778 = vand.u32 %v1563, 4294901760
    %1779 = vmatpush.msra.mxu0 %v1778
    %v1780 = vand.u32 %v1562, 4294901760
    %1781 = vmatpush.msra.mxu0 %v1780
    %v1782 = vand.u32 %v1561, 4294901760
    %1783 = vmatpush.msra.mxu0 %v1782
    %v1784 = vand.u32 %v1560, 4294901760
    %1785 = vmatpush.msra.mxu0 %v1784
    %v1786 = vand.u32 %v1559, 4294901760
    %1787 = vmatpush.msra.mxu0 %v1786
    %v1788 = vand.u32 %v1558, 4294901760
    %1789 = vmatpush.msra.mxu0 %v1788
    %v1790 = vand.u32 %v1557, 4294901760
    %1791 = vmatpush.msra.mxu0 %v1790
    %v1792 = vand.u32 %v1556, 4294901760
    %1793 = vmatpush.msra.mxu0 %v1792
    %v1794 = vand.u32 %v1555, 4294901760
    %1795 = vmatpush.msra.mxu0 %v1794
    %v1796 = vand.u32 %v1554, 4294901760
    %1797 = vmatpush.msra.mxu0 %v1796
    %v1798 = vand.u32 %v1553, 4294901760
    %v1799 = vsub.f32 %v1553, %v1798
    %v1800 = vand.u32 %v1799, 4294901760
    %1801 = vmatmul.f32.gmra.mxu0 %v1800
    %v1802 = vpop.f32.mrf.mxu0
    %v1803 = vadd.f32 %v1764, %v1802
    %1804 = vdwg.mxu0
    %v1805 = vand.u32 %v1569, 4294901760
    %v1806 = vsub.f32 %v1569, %v1805
    %v1807 = vand.u32 %v1806, 4294901760
    %1808 = vmatpush.msra.mxu0 %v1807
    %v1809 = vand.u32 %v1568, 4294901760
    %v1810 = vsub.f32 %v1568, %v1809
    %v1811 = vand.u32 %v1810, 4294901760
    %1812 = vmatpush.msra.mxu0 %v1811
    %v1813 = vand.u32 %v1567, 4294901760
    %v1814 = vsub.f32 %v1567, %v1813
    %v1815 = vand.u32 %v1814, 4294901760
    %1816 = vmatpush.msra.mxu0 %v1815
    %v1817 = vand.u32 %v1566, 4294901760
    %v1818 = vsub.f32 %v1566, %v1817
    %v1819 = vand.u32 %v1818, 4294901760
    %1820 = vmatpush.msra.mxu0 %v1819
    %v1821 = vand.u32 %v1565, 4294901760
    %v1822 = vsub.f32 %v1565, %v1821
    %v1823 = vand.u32 %v1822, 4294901760
    %1824 = vmatpush.msra.mxu0 %v1823
    %v1825 = vand.u32 %v1564, 4294901760
    %v1826 = vsub.f32 %v1564, %v1825
    %v1827 = vand.u32 %v1826, 4294901760
    %1828 = vmatpush.msra.mxu0 %v1827
    %v1829 = vand.u32 %v1563, 4294901760
    %v1830 = vsub.f32 %v1563, %v1829
    %v1831 = vand.u32 %v1830, 4294901760
    %1832 = vmatpush.msra.mxu0 %v1831
    %v1833 = vand.u32 %v1562, 4294901760
    %v1834 = vsub.f32 %v1562, %v1833
    %v1835 = vand.u32 %v1834, 4294901760
    %1836 = vmatpush.msra.mxu0 %v1835
    %v1837 = vand.u32 %v1561, 4294901760
    %v1838 = vsub.f32 %v1561, %v1837
    %v1839 = vand.u32 %v1838, 4294901760
    %1840 = vmatpush.msra.mxu0 %v1839
    %v1841 = vand.u32 %v1560, 4294901760
    %v1842 = vsub.f32 %v1560, %v1841
    %v1843 = vand.u32 %v1842, 4294901760
    %1844 = vmatpush.msra.mxu0 %v1843
    %v1845 = vand.u32 %v1559, 4294901760
    %v1846 = vsub.f32 %v1559, %v1845
    %v1847 = vand.u32 %v1846, 4294901760
    %1848 = vmatpush.msra.mxu0 %v1847
    %v1849 = vand.u32 %v1558, 4294901760
    %v1850 = vsub.f32 %v1558, %v1849
    %v1851 = vand.u32 %v1850, 4294901760
    %1852 = vmatpush.msra.mxu0 %v1851
    %v1853 = vand.u32 %v1557, 4294901760
    %v1854 = vsub.f32 %v1557, %v1853
    %v1855 = vand.u32 %v1854, 4294901760
    %1856 = vmatpush.msra.mxu0 %v1855
    %v1857 = vand.u32 %v1556, 4294901760
    %v1858 = vsub.f32 %v1556, %v1857
    %v1859 = vand.u32 %v1858, 4294901760
    %1860 = vmatpush.msra.mxu0 %v1859
    %v1861 = vand.u32 %v1555, 4294901760
    %v1862 = vsub.f32 %v1555, %v1861
    %v1863 = vand.u32 %v1862, 4294901760
    %1864 = vmatpush.msra.mxu0 %v1863
    %v1865 = vand.u32 %v1554, 4294901760
    %v1866 = vsub.f32 %v1554, %v1865
    %v1867 = vand.u32 %v1866, 4294901760
    %1868 = vmatpush.msra.mxu0 %v1867
    %v1869 = vand.u32 %v1553, 4294901760
    %1870 = vmatmul.f32.gmra.mxu0 %v1869
    %v1871 = vpop.f32.mrf.mxu0
    %v1872 = vadd.f32 %v1803, %v1871
    %1873 = vdwg.mxu0
    %v1874 = vand.u32 %v1569, 4294901760
    %1875 = vmatpush.msra.mxu0 %v1874
    %v1876 = vand.u32 %v1568, 4294901760
    %1877 = vmatpush.msra.mxu0 %v1876
    %v1878 = vand.u32 %v1567, 4294901760
    %1879 = vmatpush.msra.mxu0 %v1878
    %v1880 = vand.u32 %v1566, 4294901760
    %1881 = vmatpush.msra.mxu0 %v1880
    %v1882 = vand.u32 %v1565, 4294901760
    %1883 = vmatpush.msra.mxu0 %v1882
    %v1884 = vand.u32 %v1564, 4294901760
    %1885 = vmatpush.msra.mxu0 %v1884
    %v1886 = vand.u32 %v1563, 4294901760
    %1887 = vmatpush.msra.mxu0 %v1886
    %v1888 = vand.u32 %v1562, 4294901760
    %1889 = vmatpush.msra.mxu0 %v1888
    %v1890 = vand.u32 %v1561, 4294901760
    %1891 = vmatpush.msra.mxu0 %v1890
    %v1892 = vand.u32 %v1560, 4294901760
    %1893 = vmatpush.msra.mxu0 %v1892
    %v1894 = vand.u32 %v1559, 4294901760
    %1895 = vmatpush.msra.mxu0 %v1894
    %v1896 = vand.u32 %v1558, 4294901760
    %1897 = vmatpush.msra.mxu0 %v1896
    %v1898 = vand.u32 %v1557, 4294901760
    %1899 = vmatpush.msra.mxu0 %v1898
    %v1900 = vand.u32 %v1556, 4294901760
    %1901 = vmatpush.msra.mxu0 %v1900
    %v1902 = vand.u32 %v1555, 4294901760
    %1903 = vmatpush.msra.mxu0 %v1902
    %v1904 = vand.u32 %v1554, 4294901760
    %1905 = vmatpush.msra.mxu0 %v1904
    %v1906 = vand.u32 %v1553, 4294901760
    %1907 = vmatmul.f32.gmra.mxu0 %v1906
    %v1908 = vpop.f32.mrf.mxu0
    %v1909 = vadd.f32 %v1872, %v1908
    %1910 = vdwg.mxu0
    %v1911 = vmul.f32 %v1553, %v1553
    %v1912 = vand.u32 %v1569, 4294901760
    %1913 = vmatpush.msra.mxu0 %v1912
    %v1914 = vand.u32 %v1568, 4294901760
    %1915 = vmatpush.msra.mxu0 %v1914
    %v1916 = vand.u32 %v1567, 4294901760
    %1917 = vmatpush.msra.mxu0 %v1916
    %v1918 = vand.u32 %v1566, 4294901760
    %1919 = vmatpush.msra.mxu0 %v1918
    %v1920 = vand.u32 %v1565, 4294901760
    %1921 = vmatpush.msra.mxu0 %v1920
    %v1922 = vand.u32 %v1564, 4294901760
    %1923 = vmatpush.msra.mxu0 %v1922
    %v1924 = vand.u32 %v1563, 4294901760
    %1925 = vmatpush.msra.mxu0 %v1924
    %v1926 = vand.u32 %v1562, 4294901760
    %1927 = vmatpush.msra.mxu0 %v1926
    %v1928 = vand.u32 %v1561, 4294901760
    %1929 = vmatpush.msra.mxu0 %v1928
    %v1930 = vand.u32 %v1560, 4294901760
    %1931 = vmatpush.msra.mxu0 %v1930
    %v1932 = vand.u32 %v1559, 4294901760
    %1933 = vmatpush.msra.mxu0 %v1932
    %v1934 = vand.u32 %v1558, 4294901760
    %1935 = vmatpush.msra.mxu0 %v1934
    %v1936 = vand.u32 %v1557, 4294901760
    %1937 = vmatpush.msra.mxu0 %v1936
    %v1938 = vand.u32 %v1556, 4294901760
    %1939 = vmatpush.msra.mxu0 %v1938
    %v1940 = vand.u32 %v1555, 4294901760
    %1941 = vmatpush.msra.mxu0 %v1940
    %v1942 = vand.u32 %v1554, 4294901760
    %1943 = vmatpush.msra.mxu0 %v1942
    %v1944 = vand.u32 %v1911, 4294901760
    %v1945 = vsub.f32 %v1911, %v1944
    %v1946 = vand.u32 %v1945, 4294901760
    %v1947 = vsub.f32 %v1945, %v1946
    %v1948 = vand.u32 %v1947, 4294901760
    %1949 = vmatmul.f32.gmra.mxu0 %v1948
    %v1950 = vpop.f32.mrf.mxu0
    %v1951 = vadd.f32 0.0, %v1950
    %1952 = vdwg.mxu0
    %v1953 = vand.u32 %v1569, 4294901760
    %v1954 = vsub.f32 %v1569, %v1953
    %v1955 = vand.u32 %v1954, 4294901760
    %v1956 = vsub.f32 %v1954, %v1955
    %v1957 = vand.u32 %v1956, 4294901760
    %1958 = vmatpush.msra.mxu0 %v1957
    %v1959 = vand.u32 %v1568, 4294901760
    %v1960 = vsub.f32 %v1568, %v1959
    %v1961 = vand.u32 %v1960, 4294901760
    %v1962 = vsub.f32 %v1960, %v1961
    %v1963 = vand.u32 %v1962, 4294901760
    %1964 = vmatpush.msra.mxu0 %v1963
    %v1965 = vand.u32 %v1567, 4294901760
    %v1966 = vsub.f32 %v1567, %v1965
    %v1967 = vand.u32 %v1966, 4294901760
    %v1968 = vsub.f32 %v1966, %v1967
    %v1969 = vand.u32 %v1968, 4294901760
    %1970 = vmatpush.msra.mxu0 %v1969
    %v1971 = vand.u32 %v1566, 4294901760
    %v1972 = vsub.f32 %v1566, %v1971
    %v1973 = vand.u32 %v1972, 4294901760
    %v1974 = vsub.f32 %v1972, %v1973
    %v1975 = vand.u32 %v1974, 4294901760
    %1976 = vmatpush.msra.mxu0 %v1975
    %v1977 = vand.u32 %v1565, 4294901760
    %v1978 = vsub.f32 %v1565, %v1977
    %v1979 = vand.u32 %v1978, 4294901760
    %v1980 = vsub.f32 %v1978, %v1979
    %v1981 = vand.u32 %v1980, 4294901760
    %1982 = vmatpush.msra.mxu0 %v1981
    %v1983 = vand.u32 %v1564, 4294901760
    %v1984 = vsub.f32 %v1564, %v1983
    %v1985 = vand.u32 %v1984, 4294901760
    %v1986 = vsub.f32 %v1984, %v1985
    %v1987 = vand.u32 %v1986, 4294901760
    %1988 = vmatpush.msra.mxu0 %v1987
    %v1989 = vand.u32 %v1563, 4294901760
    %v1990 = vsub.f32 %v1563, %v1989
    %v1991 = vand.u32 %v1990, 4294901760
    %v1992 = vsub.f32 %v1990, %v1991
    %v1993 = vand.u32 %v1992, 4294901760
    %1994 = vmatpush.msra.mxu0 %v1993
    %v1995 = vand.u32 %v1562, 4294901760
    %v1996 = vsub.f32 %v1562, %v1995
    %v1997 = vand.u32 %v1996, 4294901760
    %v1998 = vsub.f32 %v1996, %v1997
    %v1999 = vand.u32 %v1998, 4294901760
    %2000 = vmatpush.msra.mxu0 %v1999
    %v2001 = vand.u32 %v1561, 4294901760
    %v2002 = vsub.f32 %v1561, %v2001
    %v2003 = vand.u32 %v2002, 4294901760
    %v2004 = vsub.f32 %v2002, %v2003
    %v2005 = vand.u32 %v2004, 4294901760
    %2006 = vmatpush.msra.mxu0 %v2005
    %v2007 = vand.u32 %v1560, 4294901760
    %v2008 = vsub.f32 %v1560, %v2007
    %v2009 = vand.u32 %v2008, 4294901760
    %v2010 = vsub.f32 %v2008, %v2009
    %v2011 = vand.u32 %v2010, 4294901760
    %2012 = vmatpush.msra.mxu0 %v2011
    %v2013 = vand.u32 %v1559, 4294901760
    %v2014 = vsub.f32 %v1559, %v2013
    %v2015 = vand.u32 %v2014, 4294901760
    %v2016 = vsub.f32 %v2014, %v2015
    %v2017 = vand.u32 %v2016, 4294901760
    %2018 = vmatpush.msra.mxu0 %v2017
    %v2019 = vand.u32 %v1558, 4294901760
    %v2020 = vsub.f32 %v1558, %v2019
    %v2021 = vand.u32 %v2020, 4294901760
    %v2022 = vsub.f32 %v2020, %v2021
    %v2023 = vand.u32 %v2022, 4294901760
    %2024 = vmatpush.msra.mxu0 %v2023
    %v2025 = vand.u32 %v1557, 4294901760
    %v2026 = vsub.f32 %v1557, %v2025
    %v2027 = vand.u32 %v2026, 4294901760
    %v2028 = vsub.f32 %v2026, %v2027
    %v2029 = vand.u32 %v2028, 4294901760
    %2030 = vmatpush.msra.mxu0 %v2029
    %v2031 = vand.u32 %v1556, 4294901760
    %v2032 = vsub.f32 %v1556, %v2031
    %v2033 = vand.u32 %v2032, 4294901760
    %v2034 = vsub.f32 %v2032, %v2033
    %v2035 = vand.u32 %v2034, 4294901760
    %2036 = vmatpush.msra.mxu0 %v2035
    %v2037 = vand.u32 %v1555, 4294901760
    %v2038 = vsub.f32 %v1555, %v2037
    %v2039 = vand.u32 %v2038, 4294901760
    %v2040 = vsub.f32 %v2038, %v2039
    %v2041 = vand.u32 %v2040, 4294901760
    %2042 = vmatpush.msra.mxu0 %v2041
    %v2043 = vand.u32 %v1554, 4294901760
    %v2044 = vsub.f32 %v1554, %v2043
    %v2045 = vand.u32 %v2044, 4294901760
    %v2046 = vsub.f32 %v2044, %v2045
    %v2047 = vand.u32 %v2046, 4294901760
    %2048 = vmatpush.msra.mxu0 %v2047
    %v2049 = vand.u32 %v1911, 4294901760
    %2050 = vmatmul.f32.gmra.mxu0 %v2049
    %v2051 = vpop.f32.mrf.mxu0
    %v2052 = vadd.f32 %v1951, %v2051
    %2053 = vdwg.mxu0
    %v2054 = vand.u32 %v1569, 4294901760
    %v2055 = vsub.f32 %v1569, %v2054
    %2056 = vmatpush.msra.mxu0 %v2055
    %v2057 = vand.u32 %v1568, 4294901760
    %v2058 = vsub.f32 %v1568, %v2057
    %2059 = vmatpush.msra.mxu0 %v2058
    %v2060 = vand.u32 %v1567, 4294901760
    %v2061 = vsub.f32 %v1567, %v2060
    %2062 = vmatpush.msra.mxu0 %v2061
    %v2063 = vand.u32 %v1566, 4294901760
    %v2064 = vsub.f32 %v1566, %v2063
    %2065 = vmatpush.msra.mxu0 %v2064
    %v2066 = vand.u32 %v1565, 4294901760
    %v2067 = vsub.f32 %v1565, %v2066
    %2068 = vmatpush.msra.mxu0 %v2067
    %v2069 = vand.u32 %v1564, 4294901760
    %v2070 = vsub.f32 %v1564, %v2069
    %2071 = vmatpush.msra.mxu0 %v2070
    %v2072 = vand.u32 %v1563, 4294901760
    %v2073 = vsub.f32 %v1563, %v2072
    %2074 = vmatpush.msra.mxu0 %v2073
    %v2075 = vand.u32 %v1562, 4294901760
    %v2076 = vsub.f32 %v1562, %v2075
    %2077 = vmatpush.msra.mxu0 %v2076
    %v2078 = vand.u32 %v1561, 4294901760
    %v2079 = vsub.f32 %v1561, %v2078
    %2080 = vmatpush.msra.mxu0 %v2079
    %v2081 = vand.u32 %v1560, 4294901760
    %v2082 = vsub.f32 %v1560, %v2081
    %2083 = vmatpush.msra.mxu0 %v2082
    %v2084 = vand.u32 %v1559, 4294901760
    %v2085 = vsub.f32 %v1559, %v2084
    %2086 = vmatpush.msra.mxu0 %v2085
    %v2087 = vand.u32 %v1558, 4294901760
    %v2088 = vsub.f32 %v1558, %v2087
    %2089 = vmatpush.msra.mxu0 %v2088
    %v2090 = vand.u32 %v1557, 4294901760
    %v2091 = vsub.f32 %v1557, %v2090
    %2092 = vmatpush.msra.mxu0 %v2091
    %v2093 = vand.u32 %v1556, 4294901760
    %v2094 = vsub.f32 %v1556, %v2093
    %2095 = vmatpush.msra.mxu0 %v2094
    %v2096 = vand.u32 %v1555, 4294901760
    %v2097 = vsub.f32 %v1555, %v2096
    %2098 = vmatpush.msra.mxu0 %v2097
    %v2099 = vand.u32 %v1554, 4294901760
    %v2100 = vsub.f32 %v1554, %v2099
    %2101 = vmatpush.msra.mxu0 %v2100
    %v2102 = vand.u32 %v1911, 4294901760
    %v2103 = vsub.f32 %v1911, %v2102
    %2104 = vmatmul.f32.gmra.mxu0 %v2103
    %v2105 = vpop.f32.mrf.mxu0
    %v2106 = vadd.f32 %v2052, %v2105
    %2107 = vdwg.mxu0
    %v2108 = vand.u32 %v1569, 4294901760
    %2109 = vmatpush.msra.mxu0 %v2108
    %v2110 = vand.u32 %v1568, 4294901760
    %2111 = vmatpush.msra.mxu0 %v2110
    %v2112 = vand.u32 %v1567, 4294901760
    %2113 = vmatpush.msra.mxu0 %v2112
    %v2114 = vand.u32 %v1566, 4294901760
    %2115 = vmatpush.msra.mxu0 %v2114
    %v2116 = vand.u32 %v1565, 4294901760
    %2117 = vmatpush.msra.mxu0 %v2116
    %v2118 = vand.u32 %v1564, 4294901760
    %2119 = vmatpush.msra.mxu0 %v2118
    %v2120 = vand.u32 %v1563, 4294901760
    %2121 = vmatpush.msra.mxu0 %v2120
    %v2122 = vand.u32 %v1562, 4294901760
    %2123 = vmatpush.msra.mxu0 %v2122
    %v2124 = vand.u32 %v1561, 4294901760
    %2125 = vmatpush.msra.mxu0 %v2124
    %v2126 = vand.u32 %v1560, 4294901760
    %2127 = vmatpush.msra.mxu0 %v2126
    %v2128 = vand.u32 %v1559, 4294901760
    %2129 = vmatpush.msra.mxu0 %v2128
    %v2130 = vand.u32 %v1558, 4294901760
    %2131 = vmatpush.msra.mxu0 %v2130
    %v2132 = vand.u32 %v1557, 4294901760
    %2133 = vmatpush.msra.mxu0 %v2132
    %v2134 = vand.u32 %v1556, 4294901760
    %2135 = vmatpush.msra.mxu0 %v2134
    %v2136 = vand.u32 %v1555, 4294901760
    %2137 = vmatpush.msra.mxu0 %v2136
    %v2138 = vand.u32 %v1554, 4294901760
    %2139 = vmatpush.msra.mxu0 %v2138
    %v2140 = vand.u32 %v1911, 4294901760
    %v2141 = vsub.f32 %v1911, %v2140
    %v2142 = vand.u32 %v2141, 4294901760
    %2143 = vmatmul.f32.gmra.mxu0 %v2142
    %v2144 = vpop.f32.mrf.mxu0
    %v2145 = vadd.f32 %v2106, %v2144
    %2146 = vdwg.mxu0
    %v2147 = vand.u32 %v1569, 4294901760
    %v2148 = vsub.f32 %v1569, %v2147
    %v2149 = vand.u32 %v2148, 4294901760
    %2150 = vmatpush.msra.mxu0 %v2149
    %v2151 = vand.u32 %v1568, 4294901760
    %v2152 = vsub.f32 %v1568, %v2151
    %v2153 = vand.u32 %v2152, 4294901760
    %2154 = vmatpush.msra.mxu0 %v2153
    %v2155 = vand.u32 %v1567, 4294901760
    %v2156 = vsub.f32 %v1567, %v2155
    %v2157 = vand.u32 %v2156, 4294901760
    %2158 = vmatpush.msra.mxu0 %v2157
    %v2159 = vand.u32 %v1566, 4294901760
    %v2160 = vsub.f32 %v1566, %v2159
    %v2161 = vand.u32 %v2160, 4294901760
    %2162 = vmatpush.msra.mxu0 %v2161
    %v2163 = vand.u32 %v1565, 4294901760
    %v2164 = vsub.f32 %v1565, %v2163
    %v2165 = vand.u32 %v2164, 4294901760
    %2166 = vmatpush.msra.mxu0 %v2165
    %v2167 = vand.u32 %v1564, 4294901760
    %v2168 = vsub.f32 %v1564, %v2167
    %v2169 = vand.u32 %v2168, 4294901760
    %2170 = vmatpush.msra.mxu0 %v2169
    %v2171 = vand.u32 %v1563, 4294901760
    %v2172 = vsub.f32 %v1563, %v2171
    %v2173 = vand.u32 %v2172, 4294901760
    %2174 = vmatpush.msra.mxu0 %v2173
    %v2175 = vand.u32 %v1562, 4294901760
    %v2176 = vsub.f32 %v1562, %v2175
    %v2177 = vand.u32 %v2176, 4294901760
    %2178 = vmatpush.msra.mxu0 %v2177
    %v2179 = vand.u32 %v1561, 4294901760
    %v2180 = vsub.f32 %v1561, %v2179
    %v2181 = vand.u32 %v2180, 4294901760
    %2182 = vmatpush.msra.mxu0 %v2181
    %v2183 = vand.u32 %v1560, 4294901760
    %v2184 = vsub.f32 %v1560, %v2183
    %v2185 = vand.u32 %v2184, 4294901760
    %2186 = vmatpush.msra.mxu0 %v2185
    %v2187 = vand.u32 %v1559, 4294901760
    %v2188 = vsub.f32 %v1559, %v2187
    %v2189 = vand.u32 %v2188, 4294901760
    %2190 = vmatpush.msra.mxu0 %v2189
    %v2191 = vand.u32 %v1558, 4294901760
    %v2192 = vsub.f32 %v1558, %v2191
    %v2193 = vand.u32 %v2192, 4294901760
    %2194 = vmatpush.msra.mxu0 %v2193
    %v2195 = vand.u32 %v1557, 4294901760
    %v2196 = vsub.f32 %v1557, %v2195
    %v2197 = vand.u32 %v2196, 4294901760
    %2198 = vmatpush.msra.mxu0 %v2197
    %v2199 = vand.u32 %v1556, 4294901760
    %v2200 = vsub.f32 %v1556, %v2199
    %v2201 = vand.u32 %v2200, 4294901760
    %2202 = vmatpush.msra.mxu0 %v2201
    %v2203 = vand.u32 %v1555, 4294901760
    %v2204 = vsub.f32 %v1555, %v2203
    %v2205 = vand.u32 %v2204, 4294901760
    %2206 = vmatpush.msra.mxu0 %v2205
    %v2207 = vand.u32 %v1554, 4294901760
    %v2208 = vsub.f32 %v1554, %v2207
    %v2209 = vand.u32 %v2208, 4294901760
    %2210 = vmatpush.msra.mxu0 %v2209
    %v2211 = vand.u32 %v1911, 4294901760
    %2212 = vmatmul.f32.gmra.mxu0 %v2211
    %v2213 = vpop.f32.mrf.mxu0
    %v2214 = vadd.f32 %v2145, %v2213
    %2215 = vdwg.mxu0
    %v2216 = vand.u32 %v1569, 4294901760
    %2217 = vmatpush.msra.mxu0 %v2216
    %v2218 = vand.u32 %v1568, 4294901760
    %2219 = vmatpush.msra.mxu0 %v2218
    %v2220 = vand.u32 %v1567, 4294901760
    %2221 = vmatpush.msra.mxu0 %v2220
    %v2222 = vand.u32 %v1566, 4294901760
    %2223 = vmatpush.msra.mxu0 %v2222
    %v2224 = vand.u32 %v1565, 4294901760
    %2225 = vmatpush.msra.mxu0 %v2224
    %v2226 = vand.u32 %v1564, 4294901760
    %2227 = vmatpush.msra.mxu0 %v2226
    %v2228 = vand.u32 %v1563, 4294901760
    %2229 = vmatpush.msra.mxu0 %v2228
    %v2230 = vand.u32 %v1562, 4294901760
    %2231 = vmatpush.msra.mxu0 %v2230
    %v2232 = vand.u32 %v1561, 4294901760
    %2233 = vmatpush.msra.mxu0 %v2232
    %v2234 = vand.u32 %v1560, 4294901760
    %2235 = vmatpush.msra.mxu0 %v2234
    %v2236 = vand.u32 %v1559, 4294901760
    %2237 = vmatpush.msra.mxu0 %v2236
    %v2238 = vand.u32 %v1558, 4294901760
    %2239 = vmatpush.msra.mxu0 %v2238
    %v2240 = vand.u32 %v1557, 4294901760
    %2241 = vmatpush.msra.mxu0 %v2240
    %v2242 = vand.u32 %v1556, 4294901760
    %2243 = vmatpush.msra.mxu0 %v2242
    %v2244 = vand.u32 %v1555, 4294901760
    %2245 = vmatpush.msra.mxu0 %v2244
    %v2246 = vand.u32 %v1554, 4294901760
    %2247 = vmatpush.msra.mxu0 %v2246
    %v2248 = vand.u32 %v1911, 4294901760
    %2249 = vmatmul.f32.gmra.mxu0 %v2248
    %v2250 = vpop.f32.mrf.mxu0
    %v2251 = vadd.f32 %v2214, %v2250
    %2252 = vdwg.mxu0
    %v2253 = vmul.f32 %v1909, %v1909
    %v2254 = vsub.f32 %v2251, %v2253
    %v2255 = vmax.f32 %v2254, 0.0
    %v2256 = vsub.f32 %v1553, %v1909
    %v2257 = vadd.f32 %v2255, 1e-05
    %v2258 = vrsqrt.pop %v2257
    %v2259 = vmul.f32 %v2258, %v2257
    %v2260 = vmul.f32 %v2259, %v2258
    %v2261 = vmul.f32 0.5, %v2260
    %v2262 = vsub.f32 1.5, %v2261
    %v2263 = vmul.f32 %v2258, %v2262
    %vm2264 = vweird.f32 %v2257
    %vm2265 = vweird.f32 %v2258
    %vm2266 = vmor %vm2264, %vm2265
    %v2267 = vsel %vm2266, %v2258, %v2263
    %v2268 = vmul.f32 %v2256, %v2267
    %v2269 = vld [vmem:[#allocation10 + $0x1] sm:$0x1]
    %v2270 = vperm.slane %v2269, 0
    %v2271 = vmul.f32 %v2268, %v2270
    %v2272 = vld [vmem:[#allocation10 + $0x2] sm:$0x1]
    %v2273 = vperm.slane %v2272, 0
    %v2274 = vadd.f32 %v2271, %v2273
    %2275 = vst [vmem:[#allocation13] sm:$0xff] %v2274
    // Predicated region
    $region50: #{tpu_custom_call.1} parent=1 // pred_check
      _
    $region51: #{tpu_custom_call.1} parent=1 // pred_check_branch
      %2277 = sbr.rel (0) target = $region53
    $region52: #{tpu_custom_call.1} parent=1 // pred_region
      %2279 = vsyncadd [#allocation4], 64
      %s2280 = sshll.u32 [#allocation13], 4
      %s2281 = int_to_ptr.vmem [resolvable:$true] %s2280
      %s2282 = sshll.u32 %s6, 4
      %s2283 = int_to_ptr.hbm [resolvable:$true] %s2282
      %2288 = dma.vmem_to_hbm [thread:$0]  %s2281, 64, %s2283, [#allocation4], 64, 64, 4
    $region53: #{tpu_custom_call.1} parent=1 // pred_fallthru
      _
    // Predicated region
    $region54: #{tpu_custom_call.1} parent=1 // pred_check
      _
    $region55: #{tpu_custom_call.1} parent=1 // pred_check_branch
      %2290 = sbr.rel (0) target = $region57
    $region56: #{tpu_custom_call.1} parent=1 // pred_region
      %2292 = dma.done [#allocation4], 128
    $region57: #{tpu_custom_call.1} parent=1 // pred_fallthru
      _
    %2293 = vsyncpa [#allocation3], 1
    %2294 = vsyncpa [#allocation6], 1
    %2295 = vsyncpa [#allocation9], 1
    %2296 = vsyncpa [#allocation12], 1
    %2297 = vsyncpa [#allocation4], 1

</llo_original>
